<compile_context>
chip_gen: v5e
topology: v5e:2x2
jax: 0.10.0
libtpu: 0.0.40
codegen_flags: <defaults>
</compile_context>

<pallas_src>
import functools

import jax
import jax.numpy as jnp
import numpy as np
from jax import lax
from jax.experimental import pallas as pl
from jax.experimental.pallas import tpu as pltpu

EPS = 1e-5  # nn.LayerNorm default


def duration_kernel(x_ref, w1_ref, b1_ref, g1_ref, be1_ref,
                    w2_ref, b2_ref, m_ref, bl_ref, out_ref, *, seq_len):
    x = x_ref[...]                                   # (R, H), f32 or bf16
    rows = x.shape[0]
    d = b1_ref.shape[-1]

    # Block-local boundary masks (block = whole sequences), broadcast ONCE and
    # reused by both conv layers.
    row_idx = lax.broadcasted_iota(jnp.int32, (rows, 1), 0)
    t_in_seq = row_idx % seq_len
    not_first = jnp.broadcast_to(t_in_seq != 0, (rows, d))
    not_last = jnp.broadcast_to(t_in_seq != seq_len - 1, (rows, d))

    def conv3(a, w_ref, b_row):
        # k=3, pad=1 conv as three tap matmuls; roll+mask applied to the
        # (R, Cout) partial products (no (R, 3*Cin) concat is materialized).
        yp = jnp.dot(a, w_ref[0], preferred_element_type=jnp.float32)  # tap t-1
        yc = jnp.dot(a, w_ref[1], preferred_element_type=jnp.float32)  # tap t
        yn = jnp.dot(a, w_ref[2], preferred_element_type=jnp.float32)  # tap t+1
        y = yc + b_row
        y = y + jnp.where(not_first, pltpu.roll(yp, shift=1, axis=0), 0.0)
        y = y + jnp.where(not_last, pltpu.roll(yn, shift=rows - 1, axis=0), 0.0)
        return y

    # ---- conv1 + relu + ln1 (stats in f32, var = E[y^2] - mu^2) ----
    h = conv3(x, w1_ref, b1_ref[...])                 # (R, D) f32
    h = jnp.maximum(h, 0.0)
    mu1 = jnp.mean(h, axis=-1, keepdims=True)
    msq1 = jnp.mean(h * h, axis=-1, keepdims=True)
    inv1 = lax.rsqrt(msq1 - mu1 * mu1 + EPS)
    h = (h - mu1) * inv1 * g1_ref[...] + be1_ref[...]

    # ---- conv2 + relu ----
    h = conv3(h.astype(w2_ref.dtype), w2_ref, b2_ref[...])   # (R, D) f32
    h = jnp.maximum(h, 0.0)

    # ---- ln2 + Linear(D->1), fully folded into per-row scalars ----
    # m_ref row0 = gamma2*wl - mean(gamma2*wl)  (centered folded weight)
    # m_ref row1 = 1/D                          (for the row mean)
    m = m_ref[...]                                            # (2, D) f32
    r = lax.dot_general(m, h, dimension_numbers=(((1,), (1,)), ((), ())),
                        preferred_element_type=jnp.float32)   # (2, R)
    s = r[0:1, :]                                             # (1, R) = h . wlc
    mu2 = r[1:2, :]                                           # (1, R) = mean(h)
    msq2 = lax.dot_general(m[1:2, :], h * h,
                           dimension_numbers=(((1,), (1,)), ((), ())),
                           preferred_element_type=jnp.float32)  # (1, R)
    inv2 = lax.rsqrt(msq2 - mu2 * mu2 + EPS)
    out_ref[...] = s * inv2 + bl_ref[...]                     # lane-dense (1, R)


def _prepare_params(pt_params, matmul_dtype):
    """PyTorch-layout params -> kernel-layout params (conv reshape + LN2/linear fold)."""
    w1_pt, b1, g1, be1, w2_pt, b2, g2, be2, wl_pt, bl = pt_params
    dd = b1.shape[0]
    # (Cout, Cin, K) -> (K, Cin, Cout); tap order [t-1, t, t+1].
    w1k = jnp.transpose(w1_pt, (2, 1, 0)).astype(matmul_dtype)
    w2k = jnp.transpose(w2_pt, (2, 1, 0)).astype(matmul_dtype)
    wl_row = wl_pt.reshape(-1).astype(jnp.float32)            # (D,)
    wlg = wl_row * g2.astype(jnp.float32)                     # fold gamma2
    wlc = wlg - jnp.mean(wlg)                                 # fold "- mu * sum(w)"
    m = jnp.stack([wlc, jnp.full((dd,), 1.0 / dd, jnp.float32)], axis=0)  # (2, D)
    bl_p = (bl.reshape(()) + jnp.dot(wl_row, be2.astype(jnp.float32)))
    bl_p = bl_p.reshape(1, 1).astype(jnp.float32)             # fold beta2 into bias
    return (w1k, b1.reshape(1, -1).astype(jnp.float32),
            g1.reshape(1, -1).astype(jnp.float32),
            be1.reshape(1, -1).astype(jnp.float32),
            w2k, b2.reshape(1, -1).astype(jnp.float32),
            m, bl_p)


def _default_rows_per_block(batch, seq_len, target=2048):
    """Largest whole-sequence row block <= target that keeps lane-dense outputs."""
    best = None
    for s in range(1, batch + 1):
        if batch % s != 0:
            continue
        rows = s * seq_len
        if rows % 128 == 0 and rows <= target:
            best = rows
    return best if best is not None else batch * seq_len


def duration_forward(hidden_states_ncl, pt_params, *, rows_per_block=None,
                     matmul_dtype=jnp.float32):
    """hidden_states_ncl: (B, H, T) float32 (PyTorch NCL). Returns (B, T)."""
    B, H, T = hidden_states_ncl.shape
    N = B * T
    if rows_per_block is None:
        rows_per_block = _default_rows_per_block(B, T)
    assert rows_per_block % T == 0, "row block must hold whole sequences"
    assert N % rows_per_block == 0, "grid must tile the batch exactly"
    assert rows_per_block % 128 == 0 or rows_per_block == N, \
        "lane-dense output block needs ROWS % 128 == 0 (or a single block)"

    w1k, b1r, g1r, be1r, w2k, b2r, m, blp = _prepare_params(pt_params, matmul_dtype)
    D = b1r.shape[-1]

    # TODO(synk): fuse this NCL->NLC transpose into the upstream producer.
    x = jnp.transpose(hidden_states_ncl, (0, 2, 1)).reshape(N, H).astype(matmul_dtype)

    grid = (N // rows_per_block,)

    # Tile-derived scoped-VMEM budget (double-buffered I/O + activation temporaries).
    itemsize = jnp.dtype(matmul_dtype).itemsize
    block_io = 2 * (rows_per_block * H * itemsize + rows_per_block * 4)
    weights = (w1k.size + w2k.size) * itemsize + (b1r.size + g1r.size + be1r.size
                                                  + b2r.size + m.size + blp.size) * 4
    temporaries = 10 * rows_per_block * D * 4
    vmem_limit = int(min(max(2 * (block_io + weights + temporaries), 8 * 2**20),
                         48 * 2**20))

    out = pl.pallas_call(
        functools.partial(duration_kernel, seq_len=T),
        out_shape=jax.ShapeDtypeStruct((1, N), jnp.float32),
        grid=grid,
        in_specs=[
            pl.BlockSpec((rows_per_block, H), lambda i: (i, 0)),   # x (blocked)
            pl.BlockSpec((3, H, D), lambda i: (0, 0, 0)),          # conv1 taps
            pl.BlockSpec((1, D), lambda i: (0, 0)),                # conv1 bias
            pl.BlockSpec((1, D), lambda i: (0, 0)),                # ln1 gamma
            pl.BlockSpec((1, D), lambda i: (0, 0)),                # ln1 beta
            pl.BlockSpec((3, D, D), lambda i: (0, 0, 0)),          # conv2 taps
            pl.BlockSpec((1, D), lambda i: (0, 0)),                # conv2 bias
            pl.BlockSpec((2, D), lambda i: (0, 0)),                # folded ln2/linear
            pl.BlockSpec((1, 1), lambda i: (0, 0)),                # folded bias
        ],
        out_specs=pl.BlockSpec((1, rows_per_block), lambda i: (0, i)),
        compiler_params=pltpu.CompilerParams(
            dimension_semantics=("parallel",),
            vmem_limit_bytes=vmem_limit,
        ),
    )(x, w1k, b1r, g1r, be1r, w2k, b2r, m, blp)
    return out.reshape(B, T)


def reference_forward(hidden_states_ncl, pt_params):
    """Pure-JAX reference using lax.conv (independent of the kernel path)."""
    w1_pt, b1, g1, be1, w2_pt, b2, g2, be2, wl_pt, bl = pt_params

    def conv1d(x_ncl, w_oik, b):
        y = lax.conv_general_dilated(
            x_ncl, w_oik, window_strides=(1,), padding=((1, 1),),
            dimension_numbers=("NCH", "OIH", "NCH"))
        return y + b[None, :, None]

    def ln(y, g, b):
        mu = jnp.mean(y, axis=-1, keepdims=True)
        var = jnp.mean((y - mu) ** 2, axis=-1, keepdims=True)
        return (y - mu) / jnp.sqrt(var + EPS) * g + b

    x = jax.nn.relu(conv1d(hidden_states_ncl, w1_pt, b1))        # (B, D, T)
    x = ln(jnp.transpose(x, (0, 2, 1)), g1, be1)                  # (B, T, D)
    x = jax.nn.relu(conv1d(jnp.transpose(x, (0, 2, 1)), w2_pt, b2))
    x = ln(jnp.transpose(x, (0, 2, 1)), g2, be2)                  # (B, T, D)
    out = x @ wl_pt.T + bl                                        # (B, T, 1)
    return out[..., 0]


if __name__ == "__main__":
    # Small shapes: hp.hidden_dim=32, hp.duration_dim=32, B=2, T=128.
    B, H, D, T = 2, 32, 32, 128
    key = jax.random.PRNGKey(0)
    k = jax.random.split(key, 12)

    # Deterministic PyTorch-layout parameters (conv weight layout (Cout, Cin, K)).
    w1_pt = jax.random.normal(k[0], (D, H, 3), jnp.float32) * 0.1
    b1 = jax.random.normal(k[1], (D,), jnp.float32) * 0.1
    w2_pt = jax.random.normal(k[2], (D, D, 3), jnp.float32) * 0.1
    b2 = jax.random.normal(k[3], (D,), jnp.float32) * 0.1
    wl_pt = jax.random.normal(k[4], (1, D), jnp.float32) * 0.1    # nn.Linear (1, D)
    bl = jax.random.normal(k[5], (1,), jnp.float32) * 0.1
    # Non-trivial LayerNorm affines so the LN2/linear folding is actually tested.
    g1 = 1.0 + 0.2 * jax.random.normal(k[7], (D,), jnp.float32)
    be1 = 0.2 * jax.random.normal(k[8], (D,), jnp.float32)
    g2 = 1.0 + 0.2 * jax.random.normal(k[9], (D,), jnp.float32)
    be2 = 0.2 * jax.random.normal(k[10], (D,), jnp.float32)
    pt_params = (w1_pt, b1, g1, be1, w2_pt, b2, g2, be2, wl_pt, bl)

    # Input: PyTorch NCL layout (B, hidden_dim, T).
    hidden_states = jax.random.normal(k[6], (B, H, T), jnp.float32)

    ref = reference_forward(hidden_states, pt_params)

    # f32 path, 2-step grid (one sequence per block).
    out = jax.block_until_ready(
        duration_forward(hidden_states, pt_params, rows_per_block=128))
    np.testing.assert_allclose(np.asarray(out), np.asarray(ref),
                               rtol=1e-4, atol=1e-4)
    assert out.shape == (B, T)

    # f32 path, multi-sequence block (exercises intra-block boundary masking).
    out2 = jax.block_until_ready(
        duration_forward(hidden_states, pt_params, rows_per_block=256))
    np.testing.assert_allclose(np.asarray(out2), np.asarray(ref),
                               rtol=1e-4, atol=1e-4)

    # bf16 matmul operands (f32 accumulation / stats), looser tolerance.
    out_bf16 = jax.block_until_ready(
        duration_forward(hidden_states, pt_params, rows_per_block=128,
                         matmul_dtype=jnp.bfloat16))
    np.testing.assert_allclose(np.asarray(out_bf16), np.asarray(ref),
                               rtol=5e-2, atol=5e-2)

    print("KERNEL_OK")
</pallas_src>

<mosaic_0001>
module attributes {stable_mosaic.version = 11 : i64} {
  func.func @duration_kernel(%arg0: i32, %arg1: memref<128x32xf32, #tpu.memory_space<vmem>>, %arg2: memref<3x32x32xf32, #tpu.memory_space<vmem>>, %arg3: memref<1x32xf32, #tpu.memory_space<vmem>>, %arg4: memref<1x32xf32, #tpu.memory_space<vmem>>, %arg5: memref<1x32xf32, #tpu.memory_space<vmem>>, %arg6: memref<3x32x32xf32, #tpu.memory_space<vmem>>, %arg7: memref<1x32xf32, #tpu.memory_space<vmem>>, %arg8: memref<2x32xf32, #tpu.memory_space<vmem>>, %arg9: memref<1x1xf32, #tpu.memory_space<vmem>>, %arg10: memref<1x128xf32, #tpu.memory_space<vmem>>) attributes {dimension_semantics = [#tpu.dimension_semantics<parallel>], iteration_bounds = array<i64: 2>, scalar_prefetch = 0 : i64, scratch_operands = 0 : i64, tpu.core_type = #tpu.core_type<tc>, window_params = [{transform_indices = @transform_0, window_bounds = array<i64: 128, 32>}, {pipeline_mode = #tpu.pipeline_mode<synchronous>, transform_indices = @transform_1, window_bounds = array<i64: 3, 32, 32>}, {pipeline_mode = #tpu.pipeline_mode<synchronous>, transform_indices = @transform_2, window_bounds = array<i64: 1, 32>}, {pipeline_mode = #tpu.pipeline_mode<synchronous>, transform_indices = @transform_3, window_bounds = array<i64: 1, 32>}, {pipeline_mode = #tpu.pipeline_mode<synchronous>, transform_indices = @transform_4, window_bounds = array<i64: 1, 32>}, {pipeline_mode = #tpu.pipeline_mode<synchronous>, transform_indices = @transform_5, window_bounds = array<i64: 3, 32, 32>}, {pipeline_mode = #tpu.pipeline_mode<synchronous>, transform_indices = @transform_6, window_bounds = array<i64: 1, 32>}, {pipeline_mode = #tpu.pipeline_mode<synchronous>, transform_indices = @transform_7, window_bounds = array<i64: 2, 32>}, {pipeline_mode = #tpu.pipeline_mode<synchronous>, transform_indices = @transform_8, window_bounds = array<i64: 1, 1>}, {transform_indices = @transform_9, window_bounds = array<i64: 1, 128>}]} {
    %c0 = arith.constant 0 : index
    %c0_0 = arith.constant 0 : index
    %0 = vector.load %arg1[%c0, %c0_0] : memref<128x32xf32, #tpu.memory_space<vmem>>, vector<128x32xf32>
    %1 = tpu.iota {dimensions = array<i32: 0>} : vector<128x1xi32>
    %c128_i32 = arith.constant 128 : i32
    %c0_i32 = arith.constant 0 : i32
    %2 = arith.cmpi eq, %c128_i32, %c0_i32 : i32
    %c1_i32 = arith.constant 1 : i32
    %3 = arith.select %2, %c1_i32, %c128_i32 : i32
    %4 = vector.broadcast %3 : i32 to vector<128x1xi32>
    %5 = arith.remsi %1, %4 : vector<128x1xi32>
    %c0_i32_1 = arith.constant 0 : i32
    %6 = vector.broadcast %c0_i32_1 : i32 to vector<128x1xi32>
    %7 = arith.cmpi ne, %5, %6 : vector<128x1xi32>
    %c0_i32_2 = arith.constant 0 : i32
    %8 = vector.broadcast %c0_i32_2 : i32 to vector<128x1xi32>
    %9 = arith.cmpi slt, %5, %8 : vector<128x1xi32>
    %c0_i32_3 = arith.constant 0 : i32
    %10 = arith.cmpi slt, %3, %c0_i32_3 : i32
    %11 = vector.broadcast %10 : i1 to vector<128x1xi1>
    %12 = vector.broadcast %11 : vector<128x1xi1> to vector<128x1xi1>
    %13 = arith.xori %9, %12 : vector<128x1xi1>
    %14 = arith.andi %13, %7 : vector<128x1xi1>
    %15 = vector.broadcast %3 : i32 to vector<128x1xi32>
    %16 = arith.addi %5, %15 : vector<128x1xi32>
    %17 = arith.select %14, %16, %5 : vector<128x1xi1>, vector<128x1xi32>
    %c0_i32_4 = arith.constant 0 : i32
    %18 = vector.broadcast %c0_i32_4 : i32 to vector<128x1xi32>
    %19 = arith.cmpi ne, %17, %18 : vector<128x1xi32>
    %20 = vector.shape_cast %19 : vector<128x1xi1> to vector<128x1xi1>
    %21 = vector.broadcast %20 : vector<128x1xi1> to vector<128x32xi1>
    %c127_i32 = arith.constant 127 : i32
    %22 = vector.broadcast %c127_i32 : i32 to vector<128x1xi32>
    %23 = arith.cmpi ne, %17, %22 : vector<128x1xi32>
    %24 = vector.shape_cast %23 : vector<128x1xi1> to vector<128x1xi1>
    %25 = vector.broadcast %24 : vector<128x1xi1> to vector<128x32xi1>
    %c0_5 = arith.constant 0 : index
    %c0_6 = arith.constant 0 : index
    %26 = vector.load %arg3[%c0_5, %c0_6] : memref<1x32xf32, #tpu.memory_space<vmem>>, vector<1x32xf32>
    %c0_7 = arith.constant 0 : index
    %c0_8 = arith.constant 0 : index
    %c0_9 = arith.constant 0 : index
    %27 = vector.load %arg2[%c0_7, %c0_8, %c0_9] : memref<3x32x32xf32, #tpu.memory_space<vmem>>, vector<1x32x32xf32>
    %28 = vector.shape_cast %27 : vector<1x32x32xf32> to vector<32x32xf32>
    %cst = arith.constant dense<0.000000e+00> : vector<128x32xf32>
    %29 = tpu.matmul %0, %28, %cst {dimension_numbers = #tpu.dot_dimension_numbers<[1], [0], [0], [1], [0, 0, 1, 1], [], []>} : vector<128x32xf32>, vector<32x32xf32>, vector<128x32xf32> -> vector<128x32xf32>
    %c1 = arith.constant 1 : index
    %c0_10 = arith.constant 0 : index
    %c0_11 = arith.constant 0 : index
    %30 = vector.load %arg2[%c1, %c0_10, %c0_11] : memref<3x32x32xf32, #tpu.memory_space<vmem>>, vector<1x32x32xf32>
    %31 = vector.shape_cast %30 : vector<1x32x32xf32> to vector<32x32xf32>
    %cst_12 = arith.constant dense<0.000000e+00> : vector<128x32xf32>
    %32 = tpu.matmul %0, %31, %cst_12 {dimension_numbers = #tpu.dot_dimension_numbers<[1], [0], [0], [1], [0, 0, 1, 1], [], []>} : vector<128x32xf32>, vector<32x32xf32>, vector<128x32xf32> -> vector<128x32xf32>
    %c2 = arith.constant 2 : index
    %c0_13 = arith.constant 0 : index
    %c0_14 = arith.constant 0 : index
    %33 = vector.load %arg2[%c2, %c0_13, %c0_14] : memref<3x32x32xf32, #tpu.memory_space<vmem>>, vector<1x32x32xf32>
    %34 = vector.shape_cast %33 : vector<1x32x32xf32> to vector<32x32xf32>
    %cst_15 = arith.constant dense<0.000000e+00> : vector<128x32xf32>
    %35 = tpu.matmul %0, %34, %cst_15 {dimension_numbers = #tpu.dot_dimension_numbers<[1], [0], [0], [1], [0, 0, 1, 1], [], []>} : vector<128x32xf32>, vector<32x32xf32>, vector<128x32xf32> -> vector<128x32xf32>
    %36 = vector.broadcast %26 : vector<1x32xf32> to vector<128x32xf32>
    %37 = arith.addf %32, %36 : vector<128x32xf32>
    %c1_i32_16 = arith.constant 1 : i32
    %38 = tpu.dynamic_rotate %29 by %c1_i32_16 dim 0 : vector<128x32xf32>, i32 -> vector<128x32xf32>
    %cst_17 = arith.constant 0.000000e+00 : f32
    %39 = vector.broadcast %cst_17 : f32 to vector<128x32xf32>
    %40 = arith.select %21, %38, %39 : vector<128x32xi1>, vector<128x32xf32>
    %41 = arith.addf %37, %40 : vector<128x32xf32>
    %c127_i32_18 = arith.constant 127 : i32
    %42 = tpu.dynamic_rotate %35 by %c127_i32_18 dim 0 : vector<128x32xf32>, i32 -> vector<128x32xf32>
    %cst_19 = arith.constant 0.000000e+00 : f32
    %43 = vector.broadcast %cst_19 : f32 to vector<128x32xf32>
    %44 = arith.select %25, %42, %43 : vector<128x32xi1>, vector<128x32xf32>
    %45 = arith.addf %41, %44 : vector<128x32xf32>
    %cst_20 = arith.constant 0.000000e+00 : f32
    %46 = vector.broadcast %cst_20 : f32 to vector<128x32xf32>
    %47 = arith.maximumf %45, %46 : vector<128x32xf32>
    %cst_21 = arith.constant dense<0.000000e+00> : vector<128xf32>
    %48 = vector.multi_reduction <add>, %47, %cst_21 [1] : vector<128x32xf32> to vector<128xf32>
    %49 = vector.shape_cast %48 : vector<128xf32> to vector<128x1xf32>
    %cst_22 = arith.constant 3.200000e+01 : f32
    %50 = vector.broadcast %cst_22 : f32 to vector<128x1xf32>
    %51 = arith.divf %49, %50 : vector<128x1xf32>
    %52 = arith.mulf %47, %47 : vector<128x32xf32>
    %cst_23 = arith.constant dense<0.000000e+00> : vector<128xf32>
    %53 = vector.multi_reduction <add>, %52, %cst_23 [1] : vector<128x32xf32> to vector<128xf32>
    %54 = vector.shape_cast %53 : vector<128xf32> to vector<128x1xf32>
    %cst_24 = arith.constant 3.200000e+01 : f32
    %55 = vector.broadcast %cst_24 : f32 to vector<128x1xf32>
    %56 = arith.divf %54, %55 : vector<128x1xf32>
    %57 = arith.mulf %51, %51 : vector<128x1xf32>
    %58 = arith.subf %56, %57 : vector<128x1xf32>
    %cst_25 = arith.constant 9.99999974E-6 : f32
    %59 = vector.broadcast %cst_25 : f32 to vector<128x1xf32>
    %60 = arith.addf %58, %59 : vector<128x1xf32>
    %61 = math.rsqrt %60 : vector<128x1xf32>
    %62 = vector.broadcast %51 : vector<128x1xf32> to vector<128x32xf32>
    %63 = arith.subf %47, %62 : vector<128x32xf32>
    %64 = vector.broadcast %61 : vector<128x1xf32> to vector<128x32xf32>
    %65 = arith.mulf %63, %64 : vector<128x32xf32>
    %c0_26 = arith.constant 0 : index
    %c0_27 = arith.constant 0 : index
    %66 = vector.load %arg4[%c0_26, %c0_27] : memref<1x32xf32, #tpu.memory_space<vmem>>, vector<1x32xf32>
    %67 = vector.broadcast %66 : vector<1x32xf32> to vector<128x32xf32>
    %68 = arith.mulf %65, %67 : vector<128x32xf32>
    %c0_28 = arith.constant 0 : index
    %c0_29 = arith.constant 0 : index
    %69 = vector.load %arg5[%c0_28, %c0_29] : memref<1x32xf32, #tpu.memory_space<vmem>>, vector<1x32xf32>
    %70 = vector.broadcast %69 : vector<1x32xf32> to vector<128x32xf32>
    %71 = arith.addf %68, %70 : vector<128x32xf32>
    %c0_30 = arith.constant 0 : index
    %c0_31 = arith.constant 0 : index
    %72 = vector.load %arg7[%c0_30, %c0_31] : memref<1x32xf32, #tpu.memory_space<vmem>>, vector<1x32xf32>
    %c0_32 = arith.constant 0 : index
    %c0_33 = arith.constant 0 : index
    %c0_34 = arith.constant 0 : index
    %73 = vector.load %arg6[%c0_32, %c0_33, %c0_34] : memref<3x32x32xf32, #tpu.memory_space<vmem>>, vector<1x32x32xf32>
    %74 = vector.shape_cast %73 : vector<1x32x32xf32> to vector<32x32xf32>
    %cst_35 = arith.constant dense<0.000000e+00> : vector<128x32xf32>
    %75 = tpu.matmul %71, %74, %cst_35 {dimension_numbers = #tpu.dot_dimension_numbers<[1], [0], [0], [1], [0, 0, 1, 1], [], []>} : vector<128x32xf32>, vector<32x32xf32>, vector<128x32xf32> -> vector<128x32xf32>
    %c1_36 = arith.constant 1 : index
    %c0_37 = arith.constant 0 : index
    %c0_38 = arith.constant 0 : index
    %76 = vector.load %arg6[%c1_36, %c0_37, %c0_38] : memref<3x32x32xf32, #tpu.memory_space<vmem>>, vector<1x32x32xf32>
    %77 = vector.shape_cast %76 : vector<1x32x32xf32> to vector<32x32xf32>
    %cst_39 = arith.constant dense<0.000000e+00> : vector<128x32xf32>
    %78 = tpu.matmul %71, %77, %cst_39 {dimension_numbers = #tpu.dot_dimension_numbers<[1], [0], [0], [1], [0, 0, 1, 1], [], []>} : vector<128x32xf32>, vector<32x32xf32>, vector<128x32xf32> -> vector<128x32xf32>
    %c2_40 = arith.constant 2 : index
    %c0_41 = arith.constant 0 : index
    %c0_42 = arith.constant 0 : index
    %79 = vector.load %arg6[%c2_40, %c0_41, %c0_42] : memref<3x32x32xf32, #tpu.memory_space<vmem>>, vector<1x32x32xf32>
    %80 = vector.shape_cast %79 : vector<1x32x32xf32> to vector<32x32xf32>
    %cst_43 = arith.constant dense<0.000000e+00> : vector<128x32xf32>
    %81 = tpu.matmul %71, %80, %cst_43 {dimension_numbers = #tpu.dot_dimension_numbers<[1], [0], [0], [1], [0, 0, 1, 1], [], []>} : vector<128x32xf32>, vector<32x32xf32>, vector<128x32xf32> -> vector<128x32xf32>
    %82 = vector.broadcast %72 : vector<1x32xf32> to vector<128x32xf32>
    %83 = arith.addf %78, %82 : vector<128x32xf32>
    %c1_i32_44 = arith.constant 1 : i32
    %84 = tpu.dynamic_rotate %75 by %c1_i32_44 dim 0 : vector<128x32xf32>, i32 -> vector<128x32xf32>
    %cst_45 = arith.constant 0.000000e+00 : f32
    %85 = vector.broadcast %cst_45 : f32 to vector<128x32xf32>
    %86 = arith.select %21, %84, %85 : vector<128x32xi1>, vector<128x32xf32>
    %87 = arith.addf %83, %86 : vector<128x32xf32>
    %c127_i32_46 = arith.constant 127 : i32
    %88 = tpu.dynamic_rotate %81 by %c127_i32_46 dim 0 : vector<128x32xf32>, i32 -> vector<128x32xf32>
    %cst_47 = arith.constant 0.000000e+00 : f32
    %89 = vector.broadcast %cst_47 : f32 to vector<128x32xf32>
    %90 = arith.select %25, %88, %89 : vector<128x32xi1>, vector<128x32xf32>
    %91 = arith.addf %87, %90 : vector<128x32xf32>
    %cst_48 = arith.constant 0.000000e+00 : f32
    %92 = vector.broadcast %cst_48 : f32 to vector<128x32xf32>
    %93 = arith.maximumf %91, %92 : vector<128x32xf32>
    %c0_49 = arith.constant 0 : index
    %c0_50 = arith.constant 0 : index
    %94 = vector.load %arg8[%c0_49, %c0_50] : memref<2x32xf32, #tpu.memory_space<vmem>>, vector<2x32xf32>
    %cst_51 = arith.constant dense<0.000000e+00> : vector<2x128xf32>
    %95 = tpu.matmul %94, %93, %cst_51 {dimension_numbers = #tpu.dot_dimension_numbers<[1], [1], [0], [0], [0, 0, 1, 0], [], []>} : vector<2x32xf32>, vector<128x32xf32>, vector<2x128xf32> -> vector<2x128xf32>
    %96 = vector.extract_strided_slice %95 {offsets = [0, 0], sizes = [1, 128], strides = [1, 1]} : vector<2x128xf32> to vector<1x128xf32>
    %97 = vector.extract_strided_slice %95 {offsets = [1, 0], sizes = [1, 128], strides = [1, 1]} : vector<2x128xf32> to vector<1x128xf32>
    %98 = vector.extract_strided_slice %94 {offsets = [1, 0], sizes = [1, 32], strides = [1, 1]} : vector<2x32xf32> to vector<1x32xf32>
    %99 = arith.mulf %93, %93 : vector<128x32xf32>
    %cst_52 = arith.constant dense<0.000000e+00> : vector<1x128xf32>
    %100 = tpu.matmul %98, %99, %cst_52 {dimension_numbers = #tpu.dot_dimension_numbers<[1], [1], [0], [0], [0, 0, 1, 0], [], []>} : vector<1x32xf32>, vector<128x32xf32>, vector<1x128xf32> -> vector<1x128xf32>
    %101 = arith.mulf %97, %97 : vector<1x128xf32>
    %102 = arith.subf %100, %101 : vector<1x128xf32>
    %cst_53 = arith.constant 9.99999974E-6 : f32
    %103 = vector.broadcast %cst_53 : f32 to vector<1x128xf32>
    %104 = arith.addf %102, %103 : vector<1x128xf32>
    %105 = math.rsqrt %104 : vector<1x128xf32>
    %106 = arith.mulf %96, %105 : vector<1x128xf32>
    %c0_54 = arith.constant 0 : index
    %c0_55 = arith.constant 0 : index
    %107 = vector.load %arg9[%c0_54, %c0_55] : memref<1x1xf32, #tpu.memory_space<vmem>>, vector<1x1xf32>
    %108 = vector.broadcast %107 : vector<1x1xf32> to vector<1x128xf32>
    %109 = arith.addf %106, %108 : vector<1x128xf32>
    %c0_56 = arith.constant 0 : index
    %c0_57 = arith.constant 0 : index
    %110 = vector.load %arg10[%c0_56, %c0_57] : memref<1x128xf32, #tpu.memory_space<vmem>>, vector<1x128xf32>
    tpu.vector_store %arg10[%c0_56, %c0_57], %109 {strides = array<i32>} : memref<1x128xf32, #tpu.memory_space<vmem>>, vector<1x128xf32>,
    return
  }
  func.func @transform_0(%arg0: i32) -> (i32, i32) {
    %c0_i32 = arith.constant 0 : i32
    %c0_i32_0 = arith.constant 0 : i32
    return %arg0, %c0_i32 : i32, i32
  }
  func.func @transform_1(%arg0: i32) -> (i32, i32, i32) {
    %c0_i32 = arith.constant 0 : i32
    %c0_i32_0 = arith.constant 0 : i32
    %c0_i32_1 = arith.constant 0 : i32
    %c0_i32_2 = arith.constant 0 : i32
    return %c0_i32, %c0_i32_0, %c0_i32_1 : i32, i32, i32
  }
  func.func @transform_2(%arg0: i32) -> (i32, i32) {
    %c0_i32 = arith.constant 0 : i32
    %c0_i32_0 = arith.constant 0 : i32
    %c0_i32_1 = arith.constant 0 : i32
    return %c0_i32, %c0_i32_0 : i32, i32
  }
  func.func @transform_3(%arg0: i32) -> (i32, i32) {
    %c0_i32 = arith.constant 0 : i32
    %c0_i32_0 = arith.constant 0 : i32
    %c0_i32_1 = arith.constant 0 : i32
    return %c0_i32, %c0_i32_0 : i32, i32
  }
  func.func @transform_4(%arg0: i32) -> (i32, i32) {
    %c0_i32 = arith.constant 0 : i32
    %c0_i32_0 = arith.constant 0 : i32
    %c0_i32_1 = arith.constant 0 : i32
    return %c0_i32, %c0_i32_0 : i32, i32
  }
  func.func @transform_5(%arg0: i32) -> (i32, i32, i32) {
    %c0_i32 = arith.constant 0 : i32
    %c0_i32_0 = arith.constant 0 : i32
    %c0_i32_1 = arith.constant 0 : i32
    %c0_i32_2 = arith.constant 0 : i32
    return %c0_i32, %c0_i32_0, %c0_i32_1 : i32, i32, i32
  }
  func.func @transform_6(%arg0: i32) -> (i32, i32) {
    %c0_i32 = arith.constant 0 : i32
    %c0_i32_0 = arith.constant 0 : i32
    %c0_i32_1 = arith.constant 0 : i32
    return %c0_i32, %c0_i32_0 : i32, i32
  }
  func.func @transform_7(%arg0: i32) -> (i32, i32) {
    %c0_i32 = arith.constant 0 : i32
    %c0_i32_0 = arith.constant 0 : i32
    %c0_i32_1 = arith.constant 0 : i32
    return %c0_i32, %c0_i32_0 : i32, i32
  }
  func.func @transform_8(%arg0: i32) -> (i32, i32) {
    %c0_i32 = arith.constant 0 : i32
    %c0_i32_0 = arith.constant 0 : i32
    %c0_i32_1 = arith.constant 0 : i32
    return %c0_i32, %c0_i32_0 : i32, i32
  }
  func.func @transform_9(%arg0: i32) -> (i32, i32) {
    %c0_i32 = arith.constant 0 : i32
    %c0_i32_0 = arith.constant 0 : i32
    return %c0_i32, %arg0 : i32, i32
  }
}

</mosaic_0001>

<llo_original>
// kernel: tpu_custom_call.1
$region0: #{tpu_custom_call.1}
  #allocation0 [shape = 'u32[]', space=smem, size = 0x4, offset = 0x4, fixed_abs, tag = 'smem constant byte address 0x4 - core index']
  #allocation1 [shape = 'u32[72,128]{1,0:T(1,128)}', space=vmem, size = 0x9000, scoped, tag = 'internal scratch']
  #allocation2 [shape = 'f32[1,1]{1,0:T(1,128)S(1)}', space=vmem, size = 0x200, scoped, tag = 'scoped memory for tpu_custom_call.1']
  %s0 = inlined_call_operand.vmem [shape: f32[256,32], index: 0, kind: input, shape index: {}]
  %s1 = inlined_call_operand.vmem [shape: f32[3,32,32], index: 1, kind: input, shape index: {}]
  %s2 = inlined_call_operand.vmem [shape: f32[1,32], index: 2, kind: input, shape index: {}]
  %s3 = inlined_call_operand.vmem [shape: f32[1,32], index: 3, kind: input, shape index: {}]
  %s4 = inlined_call_operand.vmem [shape: f32[1,32], index: 4, kind: input, shape index: {}]
  %s5 = inlined_call_operand.vmem [shape: f32[3,32,32], index: 5, kind: input, shape index: {}]
  %s6 = inlined_call_operand.vmem [shape: f32[1,32], index: 6, kind: input, shape index: {}]
  %s7 = inlined_call_operand.vmem [shape: f32[2,32], index: 7, kind: input, shape index: {}]
  %s8 = inlined_call_operand.<no memory space> [shape: f32[1,1], index: 8, kind: input, shape index: {}]
  %s9 = inlined_call_operand.hbm [shape: f32[1,256], index: 9, kind: output, shape index: {}]
  %s10 = sld [smem:[#allocation0]]
  $region69: #{tpu_custom_call.1} parent=0
    _
  %s12 = ssub.s32 1, %s10
  %s13 = scalar_select 0, %s12, %s10
  %v14 = vstv %s8
  %15 = vst [vmem:[#allocation2] sm:$0x1] %v14
  $region1: #{tpu_custom_call.1} parent=0
    #allocation3 [shape = 'u8[1024]{0}', space=vmem, size = 0x400, scoped, tag = 'output window, operand 0']
    #allocation4 [shape = 's32[2]{0}', space=sflag, size = 0x8, scoped, tag = 'scoped memory for tpu_custom_call.1']
    %16 = vsyncpa [#allocation4], 0
    %s17 = scalar_lea.sflag [#allocation4], 1
    %18 = vsyncpa %s17, 0
    loop: start=0, step=1, limit=4
    $region2: #{tpu_custom_call.1} parent=1 // loop_pre_header
      _
    $region3: #{tpu_custom_call.1} parent=1 // loop_header
      %s20 = sphi 0, %s24
      %p21 = scmp.ge.s32.totalorder %s20, 4
      %s30 = sphi 0, %s32
      %s33 = sphi 0, %s30
      %s34 = sphi 0, %s33
      %s50 = sphi 0, %s34
      %s54 = sphi 0, %s54
      %s56 = sphi 0, %s54
      %s57 = sphi 0, %s56
      %s71 = sphi 0, %s57
      %s75 = sphi 0, %s75
      %s77 = sphi 0, %s75
      %s78 = sphi 0, %s77
      %s92 = sphi 0, %s78
      %s96 = sphi 0, %s96
      %s98 = sphi 0, %s96
      %s99 = sphi 0, %s98
      %s113 = sphi 0, %s99
      %s117 = sphi 0, %s117
      %s119 = sphi 0, %s117
      %s120 = sphi 0, %s119
      %s134 = sphi 0, %s120
      %s138 = sphi 0, %s138
      %s140 = sphi 0, %s138
      %s141 = sphi 0, %s140
      %s155 = sphi 0, %s141
      %s159 = sphi 0, %s159
      %s161 = sphi 0, %s159
      %s162 = sphi 0, %s161
      %s176 = sphi 0, %s162
      %s180 = sphi 0, %s180
      %s182 = sphi 0, %s180
      %s183 = sphi 0, %s182
      %s197 = sphi 0, %s183
      %s201 = sphi 0, %s201
      %s203 = sphi 0, %s201
      %s204 = sphi 0, %s203
      %s218 = sphi 0, %s204
      %s224 = sphi 0, %s226
      %s227 = sphi 0, %s224
      %s228 = sphi 0, %s227
      %s244 = sphi 0, %s228
    $region4: #{tpu_custom_call.1} parent=1 // loop_header_branch
      %23 = sbr.rel (%p21) target = $region8
    $region5: #{tpu_custom_call.1} parent=1 // loop_body
      %s25 = ssub.s32 %s20, 1
      %s26 = ssub.s32 %s20, 2
      %s27 = sadd.s32 %s20, 1
      %s28 = ssub.s32 %s20, %s27
      %p29 = scmp.eq.s32.totalorder %s28, 0
      %s31 = sadd.s32 %s30, 1
      %s32 = scalar_select %p29, %s30, %s31
      %p35 = pneg %p29
      %p36 = scmp.eq.s32.totalorder %s20, 1
      %p37 = por %p35, %p36
      %p38 = scmp.ne.s32.totalorder %s30, %s33
      %p39 = scmp.eq.s32.totalorder %s20, 0
      %p40 = por %p38, %p39
      %p41 = scmp.ne.s32.totalorder %s30, %s33
      %p42 = scmp.eq.s32.totalorder %s25, 1
      %p43 = por %p41, %p42
      %p44 = scmp.ne.s32.totalorder %s33, %s34
      %p45 = scmp.eq.s32.totalorder %s25, 0
      %p46 = por %p44, %p45
      %p47 = scmp.ne.s32.totalorder %s33, %s34
      %p48 = scmp.eq.s32.totalorder %s26, 1
      %p49 = por %p47, %p48
      %p51 = scmp.ne.s32.totalorder %s34, %s50
      %p52 = scmp.eq.s32.totalorder %s26, 0
      %p53 = por %p51, %p52
      %s55 = sadd.s32 %s54, 1
      %p58 = scmp.eq.s32.totalorder %s20, 1
      %p59 = scmp.ne.s32.totalorder %s54, %s56
      %p60 = scmp.eq.s32.totalorder %s20, 0
      %p61 = por %p59, %p60
      %p62 = scmp.ne.s32.totalorder %s54, %s56
      %p63 = scmp.eq.s32.totalorder %s25, 1
      %p64 = por %p62, %p63
      %p65 = scmp.ne.s32.totalorder %s56, %s57
      %p66 = scmp.eq.s32.totalorder %s25, 0
      %p67 = por %p65, %p66
      %p68 = scmp.ne.s32.totalorder %s56, %s57
      %p69 = scmp.eq.s32.totalorder %s26, 1
      %p70 = por %p68, %p69
      %p72 = scmp.ne.s32.totalorder %s57, %s71
      %p73 = scmp.eq.s32.totalorder %s26, 0
      %p74 = por %p72, %p73
      %s76 = sadd.s32 %s75, 1
      %p79 = scmp.eq.s32.totalorder %s20, 1
      %p80 = scmp.ne.s32.totalorder %s75, %s77
      %p81 = scmp.eq.s32.totalorder %s20, 0
      %p82 = por %p80, %p81
      %p83 = scmp.ne.s32.totalorder %s75, %s77
      %p84 = scmp.eq.s32.totalorder %s25, 1
      %p85 = por %p83, %p84
      %p86 = scmp.ne.s32.totalorder %s77, %s78
      %p87 = scmp.eq.s32.totalorder %s25, 0
      %p88 = por %p86, %p87
      %p89 = scmp.ne.s32.totalorder %s77, %s78
      %p90 = scmp.eq.s32.totalorder %s26, 1
      %p91 = por %p89, %p90
      %p93 = scmp.ne.s32.totalorder %s78, %s92
      %p94 = scmp.eq.s32.totalorder %s26, 0
      %p95 = por %p93, %p94
      %s97 = sadd.s32 %s96, 1
      %p100 = scmp.eq.s32.totalorder %s20, 1
      %p101 = scmp.ne.s32.totalorder %s96, %s98
      %p102 = scmp.eq.s32.totalorder %s20, 0
      %p103 = por %p101, %p102
      %p104 = scmp.ne.s32.totalorder %s96, %s98
      %p105 = scmp.eq.s32.totalorder %s25, 1
      %p106 = por %p104, %p105
      %p107 = scmp.ne.s32.totalorder %s98, %s99
      %p108 = scmp.eq.s32.totalorder %s25, 0
      %p109 = por %p107, %p108
      %p110 = scmp.ne.s32.totalorder %s98, %s99
      %p111 = scmp.eq.s32.totalorder %s26, 1
      %p112 = por %p110, %p111
      %p114 = scmp.ne.s32.totalorder %s99, %s113
      %p115 = scmp.eq.s32.totalorder %s26, 0
      %p116 = por %p114, %p115
      %s118 = sadd.s32 %s117, 1
      %p121 = scmp.eq.s32.totalorder %s20, 1
      %p122 = scmp.ne.s32.totalorder %s117, %s119
      %p123 = scmp.eq.s32.totalorder %s20, 0
      %p124 = por %p122, %p123
      %p125 = scmp.ne.s32.totalorder %s117, %s119
      %p126 = scmp.eq.s32.totalorder %s25, 1
      %p127 = por %p125, %p126
      %p128 = scmp.ne.s32.totalorder %s119, %s120
      %p129 = scmp.eq.s32.totalorder %s25, 0
      %p130 = por %p128, %p129
      %p131 = scmp.ne.s32.totalorder %s119, %s120
      %p132 = scmp.eq.s32.totalorder %s26, 1
      %p133 = por %p131, %p132
      %p135 = scmp.ne.s32.totalorder %s120, %s134
      %p136 = scmp.eq.s32.totalorder %s26, 0
      %p137 = por %p135, %p136
      %s139 = sadd.s32 %s138, 1
      %p142 = scmp.eq.s32.totalorder %s20, 1
      %p143 = scmp.ne.s32.totalorder %s138, %s140
      %p144 = scmp.eq.s32.totalorder %s20, 0
      %p145 = por %p143, %p144
      %p146 = scmp.ne.s32.totalorder %s138, %s140
      %p147 = scmp.eq.s32.totalorder %s25, 1
      %p148 = por %p146, %p147
      %p149 = scmp.ne.s32.totalorder %s140, %s141
      %p150 = scmp.eq.s32.totalorder %s25, 0
      %p151 = por %p149, %p150
      %p152 = scmp.ne.s32.totalorder %s140, %s141
      %p153 = scmp.eq.s32.totalorder %s26, 1
      %p154 = por %p152, %p153
      %p156 = scmp.ne.s32.totalorder %s141, %s155
      %p157 = scmp.eq.s32.totalorder %s26, 0
      %p158 = por %p156, %p157
      %s160 = sadd.s32 %s159, 1
      %p163 = scmp.eq.s32.totalorder %s20, 1
      %p164 = scmp.ne.s32.totalorder %s159, %s161
      %p165 = scmp.eq.s32.totalorder %s20, 0
      %p166 = por %p164, %p165
      %p167 = scmp.ne.s32.totalorder %s159, %s161
      %p168 = scmp.eq.s32.totalorder %s25, 1
      %p169 = por %p167, %p168
      %p170 = scmp.ne.s32.totalorder %s161, %s162
      %p171 = scmp.eq.s32.totalorder %s25, 0
      %p172 = por %p170, %p171
      %p173 = scmp.ne.s32.totalorder %s161, %s162
      %p174 = scmp.eq.s32.totalorder %s26, 1
      %p175 = por %p173, %p174
      %p177 = scmp.ne.s32.totalorder %s162, %s176
      %p178 = scmp.eq.s32.totalorder %s26, 0
      %p179 = por %p177, %p178
      %s181 = sadd.s32 %s180, 1
      %p184 = scmp.eq.s32.totalorder %s20, 1
      %p185 = scmp.ne.s32.totalorder %s180, %s182
      %p186 = scmp.eq.s32.totalorder %s20, 0
      %p187 = por %p185, %p186
      %p188 = scmp.ne.s32.totalorder %s180, %s182
      %p189 = scmp.eq.s32.totalorder %s25, 1
      %p190 = por %p188, %p189
      %p191 = scmp.ne.s32.totalorder %s182, %s183
      %p192 = scmp.eq.s32.totalorder %s25, 0
      %p193 = por %p191, %p192
      %p194 = scmp.ne.s32.totalorder %s182, %s183
      %p195 = scmp.eq.s32.totalorder %s26, 1
      %p196 = por %p194, %p195
      %p198 = scmp.ne.s32.totalorder %s183, %s197
      %p199 = scmp.eq.s32.totalorder %s26, 0
      %p200 = por %p198, %p199
      %s202 = sadd.s32 %s201, 1
      %p205 = scmp.eq.s32.totalorder %s20, 1
      %p206 = scmp.ne.s32.totalorder %s201, %s203
      %p207 = scmp.eq.s32.totalorder %s20, 0
      %p208 = por %p206, %p207
      %p209 = scmp.ne.s32.totalorder %s201, %s203
      %p210 = scmp.eq.s32.totalorder %s25, 1
      %p211 = por %p209, %p210
      %p212 = scmp.ne.s32.totalorder %s203, %s204
      %p213 = scmp.eq.s32.totalorder %s25, 0
      %p214 = por %p212, %p213
      %p215 = scmp.ne.s32.totalorder %s203, %s204
      %p216 = scmp.eq.s32.totalorder %s26, 1
      %p217 = por %p215, %p216
      %p219 = scmp.ne.s32.totalorder %s204, %s218
      %p220 = scmp.eq.s32.totalorder %s26, 0
      %p221 = por %p219, %p220
      %s222 = ssub.s32 %s20, %s27
      %p223 = scmp.eq.s32.totalorder %s222, 0
      %s225 = sadd.s32 %s224, 1
      %s226 = scalar_select %p223, %s224, %s225
      %p229 = pneg %p223
      %p230 = scmp.eq.s32.totalorder %s20, 1
      %p231 = por %p229, %p230
      %p232 = scmp.ne.s32.totalorder %s224, %s227
      %p233 = scmp.eq.s32.totalorder %s20, 0
      %p234 = por %p232, %p233
      %p235 = scmp.ne.s32.totalorder %s224, %s227
      %p236 = scmp.eq.s32.totalorder %s25, 1
      %p237 = por %p235, %p236
      %p238 = scmp.ne.s32.totalorder %s227, %s228
      %p239 = scmp.eq.s32.totalorder %s25, 0
      %p240 = por %p238, %p239
      %p241 = scmp.ne.s32.totalorder %s227, %s228
      %p242 = scmp.eq.s32.totalorder %s26, 1
      %p243 = por %p241, %p242
      %p245 = scmp.ne.s32.totalorder %s228, %s244
      %p246 = scmp.eq.s32.totalorder %s26, 0
      %p247 = por %p245, %p246
      %p248 = scmp.le.s32.totalorder 1, %s20
      %p249 = scmp.lt.s32.totalorder %s20, 3
      %p250 = pnand %p248, %p249
      %p251 = pneg %p250
      // Predicated region
      $region9: #{tpu_custom_call.1} parent=5 // pred_check
        _
      $region10: #{tpu_custom_call.1} parent=5 // pred_check_branch
        %253 = sbr.rel (%p250) target = $region12
      $region11: #{tpu_custom_call.1} parent=5 // pred_region
        %s254 = ssub.s32 %s20, 1
        // Predicated region
        $region13: #{tpu_custom_call.1} parent=11 // pred_check
          %p255 = pneg %p67
        $region14: #{tpu_custom_call.1} parent=11 // pred_check_branch
          %257 = sbr.rel (%p255) target = $region16
        $region15: #{tpu_custom_call.1} parent=11 // pred_region
          _
        $region16: #{tpu_custom_call.1} parent=11 // pred_fallthru
          _
        // Predicated region
        $region17: #{tpu_custom_call.1} parent=11 // pred_check
          %p258 = pneg %p88
        $region18: #{tpu_custom_call.1} parent=11 // pred_check_branch
          %260 = sbr.rel (%p258) target = $region20
        $region19: #{tpu_custom_call.1} parent=11 // pred_region
          _
        $region20: #{tpu_custom_call.1} parent=11 // pred_fallthru
          _
        // Predicated region
        $region21: #{tpu_custom_call.1} parent=11 // pred_check
          %p261 = pneg %p109
        $region22: #{tpu_custom_call.1} parent=11 // pred_check_branch
          %263 = sbr.rel (%p261) target = $region24
        $region23: #{tpu_custom_call.1} parent=11 // pred_region
          _
        $region24: #{tpu_custom_call.1} parent=11 // pred_fallthru
          _
        // Predicated region
        $region25: #{tpu_custom_call.1} parent=11 // pred_check
          %p264 = pneg %p130
        $region26: #{tpu_custom_call.1} parent=11 // pred_check_branch
          %266 = sbr.rel (%p264) target = $region28
        $region27: #{tpu_custom_call.1} parent=11 // pred_region
          _
        $region28: #{tpu_custom_call.1} parent=11 // pred_fallthru
          _
        // Predicated region
        $region29: #{tpu_custom_call.1} parent=11 // pred_check
          %p267 = pneg %p151
        $region30: #{tpu_custom_call.1} parent=11 // pred_check_branch
          %269 = sbr.rel (%p267) target = $region32
        $region31: #{tpu_custom_call.1} parent=11 // pred_region
          _
        $region32: #{tpu_custom_call.1} parent=11 // pred_fallthru
          _
        // Predicated region
        $region33: #{tpu_custom_call.1} parent=11 // pred_check
          %p270 = pneg %p172
        $region34: #{tpu_custom_call.1} parent=11 // pred_check_branch
          %272 = sbr.rel (%p270) target = $region36
        $region35: #{tpu_custom_call.1} parent=11 // pred_region
          _
        $region36: #{tpu_custom_call.1} parent=11 // pred_fallthru
          _
        // Predicated region
        $region37: #{tpu_custom_call.1} parent=11 // pred_check
          %p273 = pneg %p193
        $region38: #{tpu_custom_call.1} parent=11 // pred_check_branch
          %275 = sbr.rel (%p273) target = $region40
        $region39: #{tpu_custom_call.1} parent=11 // pred_region
          _
        $region40: #{tpu_custom_call.1} parent=11 // pred_fallthru
          _
        // Predicated region
        $region41: #{tpu_custom_call.1} parent=11 // pred_check
          %p276 = pneg %p214
        $region42: #{tpu_custom_call.1} parent=11 // pred_check_branch
          %278 = sbr.rel (%p276) target = $region44
        $region43: #{tpu_custom_call.1} parent=11 // pred_region
          _
        $region44: #{tpu_custom_call.1} parent=11 // pred_fallthru
          _
      $region12: #{tpu_custom_call.1} parent=5 // pred_fallthru
        _
      %p279 = scmp.lt.s32.totalorder %s20, 2
      // Predicated region
      $region45: #{tpu_custom_call.1} parent=5 // pred_check
        %p280 = pneg %p279
      $region46: #{tpu_custom_call.1} parent=5 // pred_check_branch
        %282 = sbr.rel (%p280) target = $region48
      $region47: #{tpu_custom_call.1} parent=5 // pred_region
        // Predicated region
        $region49: #{tpu_custom_call.1} parent=47 // pred_check
          %p283 = pneg %p40
        $region50: #{tpu_custom_call.1} parent=47 // pred_check_branch
          %285 = sbr.rel (%p283) target = $region52
        $region51: #{tpu_custom_call.1} parent=47 // pred_region
          %s286 = smul.u32 16, %s20
          %p287 = scmp.lt.s32.totalorder %s286, 31
          %s288 = scalar_select %p287, %s286, 31
          %s289 = smul.addr %s288, 8
          %s290 = scalar_lea.vmem %s0, %s289
          %s291 = smul.u32 16, %s20
        $region52: #{tpu_custom_call.1} parent=47 // pred_fallthru
          _
      $region48: #{tpu_custom_call.1} parent=5 // pred_fallthru
        _
      %p292 = scmp.le.s32.totalorder 1, %s20
      %p293 = scmp.lt.s32.totalorder %s20, 3
      %p294 = pnand %p292, %p293
      %p295 = pneg %p294
      // Predicated region
      $region53: #{tpu_custom_call.1} parent=5 // pred_check
        _
      $region54: #{tpu_custom_call.1} parent=5 // pred_check_branch
        %297 = sbr.rel (%p294) target = $region56
      $region55: #{tpu_custom_call.1} parent=5 // pred_region
        %s298 = ssub.s32 %s20, 1
        %s299 = smul.u32 16, %s25
        %p300 = scmp.lt.s32.totalorder %s299, 31
        %s301 = scalar_select %p300, %s299, 31
        %s302 = smul.addr %s301, 8
        %s303 = scalar_lea.vmem %s0, %s302
        %p304 = pneg %p46
        %p305 = pneg %p43
        %p306 = pneg %p67
        %p307 = pneg %p64
        %p308 = pneg %p88
        %p309 = pneg %p85
        %p310 = pneg %p109
        %p311 = pneg %p106
        %p312 = pneg %p130
        %p313 = pneg %p127
        %p314 = pneg %p151
        %p315 = pneg %p148
        %p316 = pneg %p172
        %p317 = pneg %p169
        %p318 = pneg %p193
        %p319 = pneg %p190
        %p320 = pneg %p214
        %p321 = pneg %p211
        %p322 = pneg %p240
        %p323 = pneg %p237
        %s324 = sand.u32 %s227, 1
        %s325 = scalar_lea.sflag [#allocation4], %s324
        %s326 = sand.u32 %s227, 1
        %s327 = scalar_lea.vmem [#allocation3], %s326
        %s328 = smul.u32 16, %s25
        %p329 = scmp.lt.s32.totalorder %s328, 31
        %s330 = scalar_select %p329, %s328, 31
        %s331 = smul.addr %s330, 8
        %s332 = scalar_lea.vmem %s0, %s331
        %s333 = smul.u32 16, %s25
        %v334 = vld [vmem:[%s332] sm:$0xff]
        %v335 = vld [vmem:[%s332 + $0x8] sm:$0xff]
        %v336 = vld [vmem:[%s332 + $0x10] sm:$0xff]
        %v337 = vld [vmem:[%s332 + $0x18] sm:$0xff]
        %v338 = vld [vmem:[%s332 + $0x20] sm:$0xff]
        %v339 = vld [vmem:[%s332 + $0x28] sm:$0xff]
        %v340 = vld [vmem:[%s332 + $0x30] sm:$0xff]
        %v341 = vld [vmem:[%s332 + $0x38] sm:$0xff]
        %v342 = vld [vmem:[%s332 + $0x40] sm:$0xff]
        %v343 = vld [vmem:[%s332 + $0x48] sm:$0xff]
        %v344 = vld [vmem:[%s332 + $0x50] sm:$0xff]
        %v345 = vld [vmem:[%s332 + $0x58] sm:$0xff]
        %v346 = vld [vmem:[%s332 + $0x60] sm:$0xff]
        %v347 = vld [vmem:[%s332 + $0x68] sm:$0xff]
        %v348 = vld [vmem:[%s332 + $0x70] sm:$0xff]
        %v349 = vld [vmem:[%s332 + $0x78] sm:$0xff]
        %v350 = vlaneseq
        %v351 = vshrl.u32 %v350, 7
        %v352 = vadd.s32 %v351, 8
        %v353 = vadd.s32 %v351, 16
        %v354 = vadd.s32 %v351, 24
        %v355 = vadd.s32 %v351, 32
        %v356 = vadd.s32 %v351, 40
        %v357 = vadd.s32 %v351, 48
        %v358 = vadd.s32 %v351, 56
        %v359 = vadd.s32 %v351, 64
        %v360 = vadd.s32 %v351, 72
        %v361 = vadd.s32 %v351, 80
        %v362 = vadd.s32 %v351, 88
        %v363 = vadd.s32 %v351, 96
        %v364 = vadd.s32 %v351, 104
        %v365 = vadd.s32 %v351, 112
        %v366 = vadd.s32 %v351, 120
        %vm367 = vcmp.lt.s32.totalorder %v351, 0
        %v368 = vsub.s32 0, %v351
        %v369 = vsel %vm367, %v368, %v351
        %v370 = vshrl.u32 %v369, 7
        %v371 = vand.u32 %v369, 127
        %v372 = vsub.s32 0, %v371
        %v373 = vsel %vm367, %v372, %v371
        %vm374 = vcmp.lt.s32.totalorder %v352, 0
        %v375 = vsub.s32 0, %v352
        %v376 = vsel %vm374, %v375, %v352
        %v377 = vshrl.u32 %v376, 7
        %v378 = vand.u32 %v376, 127
        %v379 = vsub.s32 0, %v378
        %v380 = vsel %vm374, %v379, %v378
        %vm381 = vcmp.lt.s32.totalorder %v353, 0
        %v382 = vsub.s32 0, %v353
        %v383 = vsel %vm381, %v382, %v353
        %v384 = vshrl.u32 %v383, 7
        %v385 = vand.u32 %v383, 127
        %v386 = vsub.s32 0, %v385
        %v387 = vsel %vm381, %v386, %v385
        %vm388 = vcmp.lt.s32.totalorder %v354, 0
        %v389 = vsub.s32 0, %v354
        %v390 = vsel %vm388, %v389, %v354
        %v391 = vshrl.u32 %v390, 7
        %v392 = vand.u32 %v390, 127
        %v393 = vsub.s32 0, %v392
        %v394 = vsel %vm388, %v393, %v392
        %vm395 = vcmp.lt.s32.totalorder %v355, 0
        %v396 = vsub.s32 0, %v355
        %v397 = vsel %vm395, %v396, %v355
        %v398 = vshrl.u32 %v397, 7
        %v399 = vand.u32 %v397, 127
        %v400 = vsub.s32 0, %v399
        %v401 = vsel %vm395, %v400, %v399
        %vm402 = vcmp.lt.s32.totalorder %v356, 0
        %v403 = vsub.s32 0, %v356
        %v404 = vsel %vm402, %v403, %v356
        %v405 = vshrl.u32 %v404, 7
        %v406 = vand.u32 %v404, 127
        %v407 = vsub.s32 0, %v406
        %v408 = vsel %vm402, %v407, %v406
        %vm409 = vcmp.lt.s32.totalorder %v357, 0
        %v410 = vsub.s32 0, %v357
        %v411 = vsel %vm409, %v410, %v357
        %v412 = vshrl.u32 %v411, 7
        %v413 = vand.u32 %v411, 127
        %v414 = vsub.s32 0, %v413
        %v415 = vsel %vm409, %v414, %v413
        %vm416 = vcmp.lt.s32.totalorder %v358, 0
        %v417 = vsub.s32 0, %v358
        %v418 = vsel %vm416, %v417, %v358
        %v419 = vshrl.u32 %v418, 7
        %v420 = vand.u32 %v418, 127
        %v421 = vsub.s32 0, %v420
        %v422 = vsel %vm416, %v421, %v420
        %vm423 = vcmp.lt.s32.totalorder %v359, 0
        %v424 = vsub.s32 0, %v359
        %v425 = vsel %vm423, %v424, %v359
        %v426 = vshrl.u32 %v425, 7
        %v427 = vand.u32 %v425, 127
        %v428 = vsub.s32 0, %v427
        %v429 = vsel %vm423, %v428, %v427
        %vm430 = vcmp.lt.s32.totalorder %v360, 0
        %v431 = vsub.s32 0, %v360
        %v432 = vsel %vm430, %v431, %v360
        %v433 = vshrl.u32 %v432, 7
        %v434 = vand.u32 %v432, 127
        %v435 = vsub.s32 0, %v434
        %v436 = vsel %vm430, %v435, %v434
        %vm437 = vcmp.lt.s32.totalorder %v361, 0
        %v438 = vsub.s32 0, %v361
        %v439 = vsel %vm437, %v438, %v361
        %v440 = vshrl.u32 %v439, 7
        %v441 = vand.u32 %v439, 127
        %v442 = vsub.s32 0, %v441
        %v443 = vsel %vm437, %v442, %v441
        %vm444 = vcmp.lt.s32.totalorder %v362, 0
        %v445 = vsub.s32 0, %v362
        %v446 = vsel %vm444, %v445, %v362
        %v447 = vshrl.u32 %v446, 7
        %v448 = vand.u32 %v446, 127
        %v449 = vsub.s32 0, %v448
        %v450 = vsel %vm444, %v449, %v448
        %vm451 = vcmp.lt.s32.totalorder %v363, 0
        %v452 = vsub.s32 0, %v363
        %v453 = vsel %vm451, %v452, %v363
        %v454 = vshrl.u32 %v453, 7
        %v455 = vand.u32 %v453, 127
        %v456 = vsub.s32 0, %v455
        %v457 = vsel %vm451, %v456, %v455
        %vm458 = vcmp.lt.s32.totalorder %v364, 0
        %v459 = vsub.s32 0, %v364
        %v460 = vsel %vm458, %v459, %v364
        %v461 = vshrl.u32 %v460, 7
        %v462 = vand.u32 %v460, 127
        %v463 = vsub.s32 0, %v462
        %v464 = vsel %vm458, %v463, %v462
        %vm465 = vcmp.lt.s32.totalorder %v365, 0
        %v466 = vsub.s32 0, %v365
        %v467 = vsel %vm465, %v466, %v365
        %v468 = vshrl.u32 %v467, 7
        %v469 = vand.u32 %v467, 127
        %v470 = vsub.s32 0, %v469
        %v471 = vsel %vm465, %v470, %v469
        %vm472 = vcmp.lt.s32.totalorder %v366, 0
        %v473 = vsub.s32 0, %v366
        %v474 = vsel %vm472, %v473, %v366
        %v475 = vshrl.u32 %v474, 7
        %v476 = vand.u32 %v474, 127
        %v477 = vsub.s32 0, %v476
        %v478 = vsel %vm472, %v477, %v476
        %vm479 = vcmp.ne.s32.totalorder %v373, 0
        %vm480 = vcmp.ne.s32.totalorder %v380, 0
        %vm481 = vcmp.ne.s32.totalorder %v387, 0
        %vm482 = vcmp.ne.s32.totalorder %v394, 0
        %vm483 = vcmp.ne.s32.totalorder %v401, 0
        %vm484 = vcmp.ne.s32.totalorder %v408, 0
        %vm485 = vcmp.ne.s32.totalorder %v415, 0
        %vm486 = vcmp.ne.s32.totalorder %v422, 0
        %vm487 = vcmp.ne.s32.totalorder %v429, 0
        %vm488 = vcmp.ne.s32.totalorder %v436, 0
        %vm489 = vcmp.ne.s32.totalorder %v443, 0
        %vm490 = vcmp.ne.s32.totalorder %v450, 0
        %vm491 = vcmp.ne.s32.totalorder %v457, 0
        %vm492 = vcmp.ne.s32.totalorder %v464, 0
        %vm493 = vcmp.ne.s32.totalorder %v471, 0
        %vm494 = vcmp.ne.s32.totalorder %v478, 0
        %vm495 = vcmp.lt.s32.totalorder %v373, 0
        %vm496 = vcmp.lt.s32.totalorder %v380, 0
        %vm497 = vcmp.lt.s32.totalorder %v387, 0
        %vm498 = vcmp.lt.s32.totalorder %v394, 0
        %vm499 = vcmp.lt.s32.totalorder %v401, 0
        %vm500 = vcmp.lt.s32.totalorder %v408, 0
        %vm501 = vcmp.lt.s32.totalorder %v415, 0
        %vm502 = vcmp.lt.s32.totalorder %v422, 0
        %vm503 = vcmp.lt.s32.totalorder %v429, 0
        %vm504 = vcmp.lt.s32.totalorder %v436, 0
        %vm505 = vcmp.lt.s32.totalorder %v443, 0
        %vm506 = vcmp.lt.s32.totalorder %v450, 0
        %vm507 = vcmp.lt.s32.totalorder %v457, 0
        %vm508 = vcmp.lt.s32.totalorder %v464, 0
        %vm509 = vcmp.lt.s32.totalorder %v471, 0
        %vm510 = vcmp.lt.s32.totalorder %v478, 0
        %vm511 = vmand %vm495, %vm479
        %vm512 = vmand %vm496, %vm480
        %vm513 = vmand %vm497, %vm481
        %vm514 = vmand %vm498, %vm482
        %vm515 = vmand %vm499, %vm483
        %vm516 = vmand %vm500, %vm484
        %vm517 = vmand %vm501, %vm485
        %vm518 = vmand %vm502, %vm486
        %vm519 = vmand %vm503, %vm487
        %vm520 = vmand %vm504, %vm488
        %vm521 = vmand %vm505, %vm489
        %vm522 = vmand %vm506, %vm490
        %vm523 = vmand %vm507, %vm491
        %vm524 = vmand %vm508, %vm492
        %vm525 = vmand %vm509, %vm493
        %vm526 = vmand %vm510, %vm494
        %v527 = vadd.s32 %v373, 128
        %v528 = vadd.s32 %v380, 128
        %v529 = vadd.s32 %v387, 128
        %v530 = vadd.s32 %v394, 128
        %v531 = vadd.s32 %v401, 128
        %v532 = vadd.s32 %v408, 128
        %v533 = vadd.s32 %v415, 128
        %v534 = vadd.s32 %v422, 128
        %v535 = vadd.s32 %v429, 128
        %v536 = vadd.s32 %v436, 128
        %v537 = vadd.s32 %v443, 128
        %v538 = vadd.s32 %v450, 128
        %v539 = vadd.s32 %v457, 128
        %v540 = vadd.s32 %v464, 128
        %v541 = vadd.s32 %v471, 128
        %v542 = vadd.s32 %v478, 128
        %v543 = vsel %vm511, %v527, %v373
        %v544 = vsel %vm512, %v528, %v380
        %v545 = vsel %vm513, %v529, %v387
        %v546 = vsel %vm514, %v530, %v394
        %v547 = vsel %vm515, %v531, %v401
        %v548 = vsel %vm516, %v532, %v408
        %v549 = vsel %vm517, %v533, %v415
        %v550 = vsel %vm518, %v534, %v422
        %v551 = vsel %vm519, %v535, %v429
        %v552 = vsel %vm520, %v536, %v436
        %v553 = vsel %vm521, %v537, %v443
        %v554 = vsel %vm522, %v538, %v450
        %v555 = vsel %vm523, %v539, %v457
        %v556 = vsel %vm524, %v540, %v464
        %v557 = vsel %vm525, %v541, %v471
        %v558 = vsel %vm526, %v542, %v478
        %vm559 = vcmp.ne.s32.totalorder %v543, 0
        %vm560 = vcmp.ne.s32.totalorder %v544, 0
        %vm561 = vcmp.ne.s32.totalorder %v545, 0
        %vm562 = vcmp.ne.s32.totalorder %v546, 0
        %vm563 = vcmp.ne.s32.totalorder %v547, 0
        %vm564 = vcmp.ne.s32.totalorder %v548, 0
        %vm565 = vcmp.ne.s32.totalorder %v549, 0
        %vm566 = vcmp.ne.s32.totalorder %v550, 0
        %vm567 = vcmp.ne.s32.totalorder %v551, 0
        %vm568 = vcmp.ne.s32.totalorder %v552, 0
        %vm569 = vcmp.ne.s32.totalorder %v553, 0
        %vm570 = vcmp.ne.s32.totalorder %v554, 0
        %vm571 = vcmp.ne.s32.totalorder %v555, 0
        %vm572 = vcmp.ne.s32.totalorder %v556, 0
        %vm573 = vcmp.ne.s32.totalorder %v557, 0
        %vm574 = vcmp.ne.s32.totalorder %v558, 0
        %v575 = vsel %vm559, 1, 0
        %v576 = vsel %vm560, 1, 0
        %v577 = vsel %vm561, 1, 0
        %v578 = vsel %vm562, 1, 0
        %v579 = vsel %vm563, 1, 0
        %v580 = vsel %vm564, 1, 0
        %v581 = vsel %vm565, 1, 0
        %v582 = vsel %vm566, 1, 0
        %v583 = vsel %vm567, 1, 0
        %v584 = vsel %vm568, 1, 0
        %v585 = vsel %vm569, 1, 0
        %v586 = vsel %vm570, 1, 0
        %v587 = vsel %vm571, 1, 0
        %v588 = vsel %vm572, 1, 0
        %v589 = vsel %vm573, 1, 0
        %v590 = vsel %vm574, 1, 0
        %vm591 = vcmp.eq.s32.totalorder %v575, 1
        %vm592 = vcmp.eq.s32.totalorder %v576, 1
        %vm593 = vcmp.eq.s32.totalorder %v577, 1
        %vm594 = vcmp.eq.s32.totalorder %v578, 1
        %vm595 = vcmp.eq.s32.totalorder %v579, 1
        %vm596 = vcmp.eq.s32.totalorder %v580, 1
        %vm597 = vcmp.eq.s32.totalorder %v581, 1
        %vm598 = vcmp.eq.s32.totalorder %v582, 1
        %vm599 = vcmp.eq.s32.totalorder %v583, 1
        %vm600 = vcmp.eq.s32.totalorder %v584, 1
        %vm601 = vcmp.eq.s32.totalorder %v585, 1
        %vm602 = vcmp.eq.s32.totalorder %v586, 1
        %vm603 = vcmp.eq.s32.totalorder %v587, 1
        %vm604 = vcmp.eq.s32.totalorder %v588, 1
        %vm605 = vcmp.eq.s32.totalorder %v589, 1
        %vm606 = vcmp.eq.s32.totalorder %v590, 1
        %vm607 = vcmp.ne.s32.totalorder %v543, 127
        %vm608 = vcmp.ne.s32.totalorder %v544, 127
        %vm609 = vcmp.ne.s32.totalorder %v545, 127
        %vm610 = vcmp.ne.s32.totalorder %v546, 127
        %vm611 = vcmp.ne.s32.totalorder %v547, 127
        %vm612 = vcmp.ne.s32.totalorder %v548, 127
        %vm613 = vcmp.ne.s32.totalorder %v549, 127
        %vm614 = vcmp.ne.s32.totalorder %v550, 127
        %vm615 = vcmp.ne.s32.totalorder %v551, 127
        %vm616 = vcmp.ne.s32.totalorder %v552, 127
        %vm617 = vcmp.ne.s32.totalorder %v553, 127
        %vm618 = vcmp.ne.s32.totalorder %v554, 127
        %vm619 = vcmp.ne.s32.totalorder %v555, 127
        %vm620 = vcmp.ne.s32.totalorder %v556, 127
        %vm621 = vcmp.ne.s32.totalorder %v557, 127
        %vm622 = vcmp.ne.s32.totalorder %v558, 127
        %v623 = vsel %vm607, 1, 0
        %v624 = vsel %vm608, 1, 0
        %v625 = vsel %vm609, 1, 0
        %v626 = vsel %vm610, 1, 0
        %v627 = vsel %vm611, 1, 0
        %v628 = vsel %vm612, 1, 0
        %v629 = vsel %vm613, 1, 0
        %v630 = vsel %vm614, 1, 0
        %v631 = vsel %vm615, 1, 0
        %v632 = vsel %vm616, 1, 0
        %v633 = vsel %vm617, 1, 0
        %v634 = vsel %vm618, 1, 0
        %v635 = vsel %vm619, 1, 0
        %v636 = vsel %vm620, 1, 0
        %v637 = vsel %vm621, 1, 0
        %v638 = vsel %vm622, 1, 0
        %vm639 = vcmp.eq.s32.totalorder %v623, 1
        %vm640 = vcmp.eq.s32.totalorder %v624, 1
        %vm641 = vcmp.eq.s32.totalorder %v625, 1
        %vm642 = vcmp.eq.s32.totalorder %v626, 1
        %vm643 = vcmp.eq.s32.totalorder %v627, 1
        %vm644 = vcmp.eq.s32.totalorder %v628, 1
        %vm645 = vcmp.eq.s32.totalorder %v629, 1
        %vm646 = vcmp.eq.s32.totalorder %v630, 1
        %vm647 = vcmp.eq.s32.totalorder %v631, 1
        %vm648 = vcmp.eq.s32.totalorder %v632, 1
        %vm649 = vcmp.eq.s32.totalorder %v633, 1
        %vm650 = vcmp.eq.s32.totalorder %v634, 1
        %vm651 = vcmp.eq.s32.totalorder %v635, 1
        %vm652 = vcmp.eq.s32.totalorder %v636, 1
        %vm653 = vcmp.eq.s32.totalorder %v637, 1
        %vm654 = vcmp.eq.s32.totalorder %v638, 1
        %v655 = vld [vmem:[%s2] sm:$0x1]
        %v656 = vld [vmem:[%s1] sm:$0xff]
        %v657 = vld [vmem:[%s1 + $0x8] sm:$0xff]
        %v658 = vld [vmem:[%s1 + $0x10] sm:$0xff]
        %v659 = vld [vmem:[%s1 + $0x18] sm:$0xff]
        %vm660 = vcmask 261120
        %v662 = vsel %vm660, %v334, 0
        %v665 = vsel %vm660, %v335, 0
        %v668 = vsel %vm660, %v336, 0
        %v671 = vsel %vm660, %v337, 0
        %v674 = vsel %vm660, %v338, 0
        %v677 = vsel %vm660, %v339, 0
        %v680 = vsel %vm660, %v340, 0
        %v683 = vsel %vm660, %v341, 0
        %v686 = vsel %vm660, %v342, 0
        %v689 = vsel %vm660, %v343, 0
        %v692 = vsel %vm660, %v344, 0
        %v695 = vsel %vm660, %v345, 0
        %v698 = vsel %vm660, %v346, 0
        %v701 = vsel %vm660, %v347, 0
        %v704 = vsel %vm660, %v348, 0
        %v707 = vsel %vm660, %v349, 0
        %709 = vmatpush.msra.mxu0 0.0
        %710 = vmatpush.msra.mxu0 0.0
        %711 = vmatpush.msra.mxu0 0.0
        %712 = vmatpush.msra.mxu0 0.0
        %713 = vmatpush.msra.mxu0 0.0
        %714 = vmatpush.msra.mxu0 0.0
        %715 = vmatpush.msra.mxu0 0.0
        %716 = vmatpush.msra.mxu0 0.0
        %717 = vmatpush.msra.mxu0 0.0
        %718 = vmatpush.msra.mxu0 0.0
        %719 = vmatpush.msra.mxu0 0.0
        %720 = vmatpush.msra.mxu0 0.0
        %721 = vmatpush.msra.mxu0 %v659
        %722 = vmatpush.msra.mxu0 %v658
        %723 = vmatpush.msra.mxu0 %v657
        %724 = vmatpush.msra.mxu0 %v656
        %725 = vmatmul.f32.gmra.mxu0 %v662
        %v726 = vpop.f32.mrf.mxu0
        %v727 = vadd.f32 0.0, %v726
        %728 = vmatmul.f32.gmra.mxu0 %v665
        %v729 = vpop.f32.mrf.mxu0
        %v730 = vadd.f32 0.0, %v729
        %731 = vmatmul.f32.gmra.mxu0 %v668
        %v732 = vpop.f32.mrf.mxu0
        %v733 = vadd.f32 0.0, %v732
        %734 = vmatmul.f32.gmra.mxu0 %v671
        %v735 = vpop.f32.mrf.mxu0
        %v736 = vadd.f32 0.0, %v735
        %737 = vmatmul.f32.gmra.mxu0 %v674
        %v738 = vpop.f32.mrf.mxu0
        %v739 = vadd.f32 0.0, %v738
        %740 = vmatmul.f32.gmra.mxu0 %v677
        %v741 = vpop.f32.mrf.mxu0
        %v742 = vadd.f32 0.0, %v741
        %743 = vmatmul.f32.gmra.mxu0 %v680
        %v744 = vpop.f32.mrf.mxu0
        %v745 = vadd.f32 0.0, %v744
        %746 = vmatmul.f32.gmra.mxu0 %v683
        %v747 = vpop.f32.mrf.mxu0
        %v748 = vadd.f32 0.0, %v747
        %749 = vmatmul.f32.gmra.mxu0 %v686
        %v750 = vpop.f32.mrf.mxu0
        %v751 = vadd.f32 0.0, %v750
        %752 = vmatmul.f32.gmra.mxu0 %v689
        %v753 = vpop.f32.mrf.mxu0
        %v754 = vadd.f32 0.0, %v753
        %755 = vmatmul.f32.gmra.mxu0 %v692
        %v756 = vpop.f32.mrf.mxu0
        %v757 = vadd.f32 0.0, %v756
        %758 = vmatmul.f32.gmra.mxu0 %v695
        %v759 = vpop.f32.mrf.mxu0
        %v760 = vadd.f32 0.0, %v759
        %761 = vmatmul.f32.gmra.mxu0 %v698
        %v762 = vpop.f32.mrf.mxu0
        %v763 = vadd.f32 0.0, %v762
        %764 = vmatmul.f32.gmra.mxu0 %v701
        %v765 = vpop.f32.mrf.mxu0
        %v766 = vadd.f32 0.0, %v765
        %767 = vmatmul.f32.gmra.mxu0 %v704
        %v768 = vpop.f32.mrf.mxu0
        %v769 = vadd.f32 0.0, %v768
        %770 = vmatmul.f32.gmra.mxu0 %v707
        %v771 = vpop.f32.mrf.mxu0
        %v772 = vadd.f32 0.0, %v771
        %773 = vdwg.mxu0
        %s774 = scalar_lea.vmem %s1, 32
        %v775 = vld [vmem:[%s774] sm:$0xff]
        %v776 = vld [vmem:[%s774 + $0x8] sm:$0xff]
        %v777 = vld [vmem:[%s774 + $0x10] sm:$0xff]
        %v778 = vld [vmem:[%s774 + $0x18] sm:$0xff]
        %s779 = scalar_lea.vmem %s1, 64
        %v780 = vld [vmem:[%s779] sm:$0xff]
        %v781 = vld [vmem:[%s779 + $0x8] sm:$0xff]
        %v782 = vld [vmem:[%s779 + $0x10] sm:$0xff]
        %v783 = vld [vmem:[%s779 + $0x18] sm:$0xff]
        %784 = vmatpush.msra.mxu0 0.0
        %785 = vmatpush.msra.mxu0 0.0
        %786 = vmatpush.msra.mxu0 0.0
        %787 = vmatpush.msra.mxu0 0.0
        %788 = vmatpush.msra.mxu0 0.0
        %789 = vmatpush.msra.mxu0 0.0
        %790 = vmatpush.msra.mxu0 0.0
        %791 = vmatpush.msra.mxu0 0.0
        %792 = vmatpush.msra.mxu0 0.0
        %793 = vmatpush.msra.mxu0 0.0
        %794 = vmatpush.msra.mxu0 0.0
        %795 = vmatpush.msra.mxu0 0.0
        %796 = vmatpush.msra.mxu0 %v783
        %797 = vmatpush.msra.mxu0 %v782
        %798 = vmatpush.msra.mxu0 %v781
        %799 = vmatpush.msra.mxu0 %v780
        %800 = vmatmul.f32.gmra.mxu0 %v662
        %v801 = vpop.f32.mrf.mxu0
        %v802 = vadd.f32 0.0, %v801
        %803 = vmatmul.f32.gmra.mxu0 %v665
        %v804 = vpop.f32.mrf.mxu0
        %v805 = vadd.f32 0.0, %v804
        %806 = vmatmul.f32.gmra.mxu0 %v668
        %v807 = vpop.f32.mrf.mxu0
        %v808 = vadd.f32 0.0, %v807
        %809 = vmatmul.f32.gmra.mxu0 %v671
        %v810 = vpop.f32.mrf.mxu0
        %v811 = vadd.f32 0.0, %v810
        %812 = vmatmul.f32.gmra.mxu0 %v674
        %v813 = vpop.f32.mrf.mxu0
        %v814 = vadd.f32 0.0, %v813
        %815 = vmatmul.f32.gmra.mxu0 %v677
        %v816 = vpop.f32.mrf.mxu0
        %v817 = vadd.f32 0.0, %v816
        %818 = vmatmul.f32.gmra.mxu0 %v680
        %v819 = vpop.f32.mrf.mxu0
        %v820 = vadd.f32 0.0, %v819
        %821 = vmatmul.f32.gmra.mxu0 %v683
        %v822 = vpop.f32.mrf.mxu0
        %v823 = vadd.f32 0.0, %v822
        %824 = vmatmul.f32.gmra.mxu0 %v686
        %v825 = vpop.f32.mrf.mxu0
        %v826 = vadd.f32 0.0, %v825
        %827 = vmatmul.f32.gmra.mxu0 %v689
        %v828 = vpop.f32.mrf.mxu0
        %v829 = vadd.f32 0.0, %v828
        %830 = vmatmul.f32.gmra.mxu0 %v692
        %v831 = vpop.f32.mrf.mxu0
        %v832 = vadd.f32 0.0, %v831
        %833 = vmatmul.f32.gmra.mxu0 %v695
        %v834 = vpop.f32.mrf.mxu0
        %v835 = vadd.f32 0.0, %v834
        %836 = vmatmul.f32.gmra.mxu0 %v698
        %v837 = vpop.f32.mrf.mxu0
        %v838 = vadd.f32 0.0, %v837
        %839 = vmatmul.f32.gmra.mxu0 %v701
        %v840 = vpop.f32.mrf.mxu0
        %v841 = vadd.f32 0.0, %v840
        %842 = vmatmul.f32.gmra.mxu0 %v704
        %v843 = vpop.f32.mrf.mxu0
        %v844 = vadd.f32 0.0, %v843
        %845 = vmatmul.f32.gmra.mxu0 %v707
        %v846 = vpop.f32.mrf.mxu0
        %v847 = vadd.f32 0.0, %v846
        %848 = vdwg.mxu0
        %v850 = vperm.slane %v655, 0
        %852 = vmatpush.msra.mxu0 0.0
        %853 = vmatpush.msra.mxu0 0.0
        %854 = vmatpush.msra.mxu0 0.0
        %855 = vmatpush.msra.mxu0 0.0
        %856 = vmatpush.msra.mxu0 0.0
        %857 = vmatpush.msra.mxu0 0.0
        %858 = vmatpush.msra.mxu0 0.0
        %859 = vmatpush.msra.mxu0 0.0
        %860 = vmatpush.msra.mxu0 0.0
        %861 = vmatpush.msra.mxu0 0.0
        %862 = vmatpush.msra.mxu0 0.0
        %863 = vmatpush.msra.mxu0 0.0
        %864 = vmatpush.msra.mxu0 %v778
        %865 = vmatpush.msra.mxu0 %v777
        %866 = vmatpush.msra.mxu0 %v776
        %867 = vmatpush.msra.mxu0 %v775
        %868 = vmatmul.f32.gmra.mxu0 %v662
        %v869 = vpop.f32.mrf.mxu0
        %v870 = vadd.f32 %v850, %v869
        %871 = vmatmul.f32.gmra.mxu0 %v665
        %v872 = vpop.f32.mrf.mxu0
        %v873 = vadd.f32 %v850, %v872
        %874 = vmatmul.f32.gmra.mxu0 %v668
        %v875 = vpop.f32.mrf.mxu0
        %v876 = vadd.f32 %v850, %v875
        %877 = vmatmul.f32.gmra.mxu0 %v671
        %v878 = vpop.f32.mrf.mxu0
        %v879 = vadd.f32 %v850, %v878
        %880 = vmatmul.f32.gmra.mxu0 %v674
        %v881 = vpop.f32.mrf.mxu0
        %v882 = vadd.f32 %v850, %v881
        %883 = vmatmul.f32.gmra.mxu0 %v677
        %v884 = vpop.f32.mrf.mxu0
        %v885 = vadd.f32 %v850, %v884
        %886 = vmatmul.f32.gmra.mxu0 %v680
        %v887 = vpop.f32.mrf.mxu0
        %v888 = vadd.f32 %v850, %v887
        %889 = vmatmul.f32.gmra.mxu0 %v683
        %v890 = vpop.f32.mrf.mxu0
        %v891 = vadd.f32 %v850, %v890
        %892 = vmatmul.f32.gmra.mxu0 %v686
        %v893 = vpop.f32.mrf.mxu0
        %v894 = vadd.f32 %v850, %v893
        %895 = vmatmul.f32.gmra.mxu0 %v689
        %v896 = vpop.f32.mrf.mxu0
        %v897 = vadd.f32 %v850, %v896
        %898 = vmatmul.f32.gmra.mxu0 %v692
        %v899 = vpop.f32.mrf.mxu0
        %v900 = vadd.f32 %v850, %v899
        %901 = vmatmul.f32.gmra.mxu0 %v695
        %v902 = vpop.f32.mrf.mxu0
        %v903 = vadd.f32 %v850, %v902
        %904 = vmatmul.f32.gmra.mxu0 %v698
        %v905 = vpop.f32.mrf.mxu0
        %v906 = vadd.f32 %v850, %v905
        %907 = vmatmul.f32.gmra.mxu0 %v701
        %v908 = vpop.f32.mrf.mxu0
        %v909 = vadd.f32 %v850, %v908
        %910 = vmatmul.f32.gmra.mxu0 %v704
        %v911 = vpop.f32.mrf.mxu0
        %v912 = vadd.f32 %v850, %v911
        %913 = vmatmul.f32.gmra.mxu0 %v707
        %v914 = vpop.f32.mrf.mxu0
        %v915 = vadd.f32 %v850, %v914
        %916 = vdwg.mxu0
        %v917 = vrot.slane %v727, 7
        %v918 = vrot.slane %v730, 7
        %v919 = vrot.slane %v733, 7
        %v920 = vrot.slane %v736, 7
        %v921 = vrot.slane %v739, 7
        %v922 = vrot.slane %v742, 7
        %v923 = vrot.slane %v745, 7
        %v924 = vrot.slane %v748, 7
        %v925 = vrot.slane %v751, 7
        %v926 = vrot.slane %v754, 7
        %v927 = vrot.slane %v757, 7
        %v928 = vrot.slane %v760, 7
        %v929 = vrot.slane %v763, 7
        %v930 = vrot.slane %v766, 7
        %v931 = vrot.slane %v769, 7
        %v932 = vrot.slane %v772, 7
        %vm933 = vcmp.lt.s32.totalorder %v351, 1
        %v934 = vsel %vm933, %v931, %v932
        %v935 = vsel %vm933, %v930, %v931
        %v936 = vsel %vm933, %v929, %v930
        %v937 = vsel %vm933, %v928, %v929
        %v938 = vsel %vm933, %v927, %v928
        %v939 = vsel %vm933, %v926, %v927
        %v940 = vsel %vm933, %v925, %v926
        %v941 = vsel %vm933, %v924, %v925
        %v942 = vsel %vm933, %v923, %v924
        %v943 = vsel %vm933, %v922, %v923
        %v944 = vsel %vm933, %v921, %v922
        %v945 = vsel %vm933, %v920, %v921
        %v946 = vsel %vm933, %v919, %v920
        %v947 = vsel %vm933, %v918, %v919
        %v948 = vsel %vm933, %v917, %v918
        %v949 = vsel %vm933, %v932, %v917
        %v950 = vsel %vm591, %v949, 0.0
        %v951 = vsel %vm592, %v948, 0.0
        %v952 = vsel %vm593, %v947, 0.0
        %v953 = vsel %vm594, %v946, 0.0
        %v954 = vsel %vm595, %v945, 0.0
        %v955 = vsel %vm596, %v944, 0.0
        %v956 = vsel %vm597, %v943, 0.0
        %v957 = vsel %vm598, %v942, 0.0
        %v958 = vsel %vm599, %v941, 0.0
        %v959 = vsel %vm600, %v940, 0.0
        %v960 = vsel %vm601, %v939, 0.0
        %v961 = vsel %vm602, %v938, 0.0
        %v962 = vsel %vm603, %v937, 0.0
        %v963 = vsel %vm604, %v936, 0.0
        %v964 = vsel %vm605, %v935, 0.0
        %v965 = vsel %vm606, %v934, 0.0
        %v966 = vadd.f32 %v870, %v950
        %v967 = vadd.f32 %v873, %v951
        %v968 = vadd.f32 %v876, %v952
        %v969 = vadd.f32 %v879, %v953
        %v970 = vadd.f32 %v882, %v954
        %v971 = vadd.f32 %v885, %v955
        %v972 = vadd.f32 %v888, %v956
        %v973 = vadd.f32 %v891, %v957
        %v974 = vadd.f32 %v894, %v958
        %v975 = vadd.f32 %v897, %v959
        %v976 = vadd.f32 %v900, %v960
        %v977 = vadd.f32 %v903, %v961
        %v978 = vadd.f32 %v906, %v962
        %v979 = vadd.f32 %v909, %v963
        %v980 = vadd.f32 %v912, %v964
        %v981 = vadd.f32 %v915, %v965
        %v982 = vrot.slane %v802, 1
        %v983 = vrot.slane %v805, 1
        %v984 = vrot.slane %v808, 1
        %v985 = vrot.slane %v811, 1
        %v986 = vrot.slane %v814, 1
        %v987 = vrot.slane %v817, 1
        %v988 = vrot.slane %v820, 1
        %v989 = vrot.slane %v823, 1
        %v990 = vrot.slane %v826, 1
        %v991 = vrot.slane %v829, 1
        %v992 = vrot.slane %v832, 1
        %v993 = vrot.slane %v835, 1
        %v994 = vrot.slane %v838, 1
        %v995 = vrot.slane %v841, 1
        %v996 = vrot.slane %v844, 1
        %v997 = vrot.slane %v847, 1
        %vm998 = vcmp.lt.s32.totalorder %v351, 7
        %v999 = vsel %vm998, %v996, %v997
        %v1000 = vsel %vm998, %v995, %v996
        %v1001 = vsel %vm998, %v994, %v995
        %v1002 = vsel %vm998, %v993, %v994
        %v1003 = vsel %vm998, %v992, %v993
        %v1004 = vsel %vm998, %v991, %v992
        %v1005 = vsel %vm998, %v990, %v991
        %v1006 = vsel %vm998, %v989, %v990
        %v1007 = vsel %vm998, %v988, %v989
        %v1008 = vsel %vm998, %v987, %v988
        %v1009 = vsel %vm998, %v986, %v987
        %v1010 = vsel %vm998, %v985, %v986
        %v1011 = vsel %vm998, %v984, %v985
        %v1012 = vsel %vm998, %v983, %v984
        %v1013 = vsel %vm998, %v982, %v983
        %v1014 = vsel %vm998, %v997, %v982
        %v1015 = vsel %vm639, %v1013, 0.0
        %v1016 = vsel %vm640, %v1012, 0.0
        %v1017 = vsel %vm641, %v1011, 0.0
        %v1018 = vsel %vm642, %v1010, 0.0
        %v1019 = vsel %vm643, %v1009, 0.0
        %v1020 = vsel %vm644, %v1008, 0.0
        %v1021 = vsel %vm645, %v1007, 0.0
        %v1022 = vsel %vm646, %v1006, 0.0
        %v1023 = vsel %vm647, %v1005, 0.0
        %v1024 = vsel %vm648, %v1004, 0.0
        %v1025 = vsel %vm649, %v1003, 0.0
        %v1026 = vsel %vm650, %v1002, 0.0
        %v1027 = vsel %vm651, %v1001, 0.0
        %v1028 = vsel %vm652, %v1000, 0.0
        %v1029 = vsel %vm653, %v999, 0.0
        %v1030 = vsel %vm654, %v1014, 0.0
        %v1031 = vadd.f32 %v966, %v1015
        %v1032 = vadd.f32 %v967, %v1016
        %v1033 = vadd.f32 %v968, %v1017
        %v1034 = vadd.f32 %v969, %v1018
        %v1035 = vadd.f32 %v970, %v1019
        %v1036 = vadd.f32 %v971, %v1020
        %v1037 = vadd.f32 %v972, %v1021
        %v1038 = vadd.f32 %v973, %v1022
        %v1039 = vadd.f32 %v974, %v1023
        %v1040 = vadd.f32 %v975, %v1024
        %v1041 = vadd.f32 %v976, %v1025
        %v1042 = vadd.f32 %v977, %v1026
        %v1043 = vadd.f32 %v978, %v1027
        %v1044 = vadd.f32 %v979, %v1028
        %v1045 = vadd.f32 %v980, %v1029
        %v1046 = vadd.f32 %v981, %v1030
        %v1047 = vmax.f32 %v1031, 0.0
        %v1048 = vmax.f32 %v1032, 0.0
        %v1049 = vmax.f32 %v1033, 0.0
        %v1050 = vmax.f32 %v1034, 0.0
        %v1051 = vmax.f32 %v1035, 0.0
        %v1052 = vmax.f32 %v1036, 0.0
        %v1053 = vmax.f32 %v1037, 0.0
        %v1054 = vmax.f32 %v1038, 0.0
        %v1055 = vmax.f32 %v1039, 0.0
        %v1056 = vmax.f32 %v1040, 0.0
        %v1057 = vmax.f32 %v1041, 0.0
        %v1058 = vmax.f32 %v1042, 0.0
        %v1059 = vmax.f32 %v1043, 0.0
        %v1060 = vmax.f32 %v1044, 0.0
        %v1061 = vmax.f32 %v1045, 0.0
        %v1062 = vmax.f32 %v1046, 0.0
        %v1063 = vsel %vm660, %v1047, 0.0
        %1064 = vadd.xlane.f32.xlu0 %v1063
        %v1065 = vpop.xlane.xlu0 %1064
        %v1066 = vsel %vm660, %v1048, 0.0
        %1067 = vadd.xlane.f32.xlu0 %v1066
        %v1068 = vpop.xlane.xlu0 %1067
        %v1069 = vsel %vm660, %v1049, 0.0
        %1070 = vadd.xlane.f32.xlu0 %v1069
        %v1071 = vpop.xlane.xlu0 %1070
        %v1072 = vsel %vm660, %v1050, 0.0
        %1073 = vadd.xlane.f32.xlu0 %v1072
        %v1074 = vpop.xlane.xlu0 %1073
        %v1075 = vsel %vm660, %v1051, 0.0
        %1076 = vadd.xlane.f32.xlu0 %v1075
        %v1077 = vpop.xlane.xlu0 %1076
        %v1078 = vsel %vm660, %v1052, 0.0
        %1079 = vadd.xlane.f32.xlu0 %v1078
        %v1080 = vpop.xlane.xlu0 %1079
        %v1081 = vsel %vm660, %v1053, 0.0
        %1082 = vadd.xlane.f32.xlu0 %v1081
        %v1083 = vpop.xlane.xlu0 %1082
        %v1084 = vsel %vm660, %v1054, 0.0
        %1085 = vadd.xlane.f32.xlu0 %v1084
        %v1086 = vpop.xlane.xlu0 %1085
        %v1087 = vsel %vm660, %v1055, 0.0
        %1088 = vadd.xlane.f32.xlu0 %v1087
        %v1089 = vpop.xlane.xlu0 %1088
        %v1090 = vsel %vm660, %v1056, 0.0
        %1091 = vadd.xlane.f32.xlu0 %v1090
        %v1092 = vpop.xlane.xlu0 %1091
        %v1093 = vsel %vm660, %v1057, 0.0
        %1094 = vadd.xlane.f32.xlu0 %v1093
        %v1095 = vpop.xlane.xlu0 %1094
        %v1096 = vsel %vm660, %v1058, 0.0
        %1097 = vadd.xlane.f32.xlu0 %v1096
        %v1098 = vpop.xlane.xlu0 %1097
        %v1099 = vsel %vm660, %v1059, 0.0
        %1100 = vadd.xlane.f32.xlu0 %v1099
        %v1101 = vpop.xlane.xlu0 %1100
        %v1102 = vsel %vm660, %v1060, 0.0
        %1103 = vadd.xlane.f32.xlu0 %v1102
        %v1104 = vpop.xlane.xlu0 %1103
        %v1105 = vsel %vm660, %v1061, 0.0
        %1106 = vadd.xlane.f32.xlu0 %v1105
        %v1107 = vpop.xlane.xlu0 %1106
        %v1108 = vsel %vm660, %v1062, 0.0
        %1109 = vadd.xlane.f32.xlu0 %v1108
        %v1110 = vpop.xlane.xlu0 %1109
        %v1111 = vrcp.pop 32.0
        %v1112 = vmul.f32 32.0, %v1111
        %v1113 = vsub.f32 1.0, %v1112
        %v1114 = vmul.f32 %v1111, %v1113
        %v1115 = vadd.f32 %v1111, %v1114
        %vm1116 = vweird.f32 %v1111
        %v1117 = vsel %vm1116, %v1111, %v1115
        %v1118 = vmul.f32 %v1065, %v1117
        %v1119 = vmul.f32 %v1068, %v1117
        %v1120 = vmul.f32 %v1071, %v1117
        %v1121 = vmul.f32 %v1074, %v1117
        %v1122 = vmul.f32 %v1077, %v1117
        %v1123 = vmul.f32 %v1080, %v1117
        %v1124 = vmul.f32 %v1083, %v1117
        %v1125 = vmul.f32 %v1086, %v1117
        %v1126 = vmul.f32 %v1089, %v1117
        %v1127 = vmul.f32 %v1092, %v1117
        %v1128 = vmul.f32 %v1095, %v1117
        %v1129 = vmul.f32 %v1098, %v1117
        %v1130 = vmul.f32 %v1101, %v1117
        %v1131 = vmul.f32 %v1104, %v1117
        %v1132 = vmul.f32 %v1107, %v1117
        %v1133 = vmul.f32 %v1110, %v1117
        %v1134 = vmul.f32 %v1047, %v1047
        %v1135 = vmul.f32 %v1048, %v1048
        %v1136 = vmul.f32 %v1049, %v1049
        %v1137 = vmul.f32 %v1050, %v1050
        %v1138 = vmul.f32 %v1051, %v1051
        %v1139 = vmul.f32 %v1052, %v1052
        %v1140 = vmul.f32 %v1053, %v1053
        %v1141 = vmul.f32 %v1054, %v1054
        %v1142 = vmul.f32 %v1055, %v1055
        %v1143 = vmul.f32 %v1056, %v1056
        %v1144 = vmul.f32 %v1057, %v1057
        %v1145 = vmul.f32 %v1058, %v1058
        %v1146 = vmul.f32 %v1059, %v1059
        %v1147 = vmul.f32 %v1060, %v1060
        %v1148 = vmul.f32 %v1061, %v1061
        %v1149 = vmul.f32 %v1062, %v1062
        %v1150 = vsel %vm660, %v1134, 0.0
        %1151 = vadd.xlane.f32.xlu0 %v1150
        %v1152 = vpop.xlane.xlu0 %1151
        %v1153 = vsel %vm660, %v1135, 0.0
        %1154 = vadd.xlane.f32.xlu0 %v1153
        %v1155 = vpop.xlane.xlu0 %1154
        %v1156 = vsel %vm660, %v1136, 0.0
        %1157 = vadd.xlane.f32.xlu0 %v1156
        %v1158 = vpop.xlane.xlu0 %1157
        %v1159 = vsel %vm660, %v1137, 0.0
        %1160 = vadd.xlane.f32.xlu0 %v1159
        %v1161 = vpop.xlane.xlu0 %1160
        %v1162 = vsel %vm660, %v1138, 0.0
        %1163 = vadd.xlane.f32.xlu0 %v1162
        %v1164 = vpop.xlane.xlu0 %1163
        %v1165 = vsel %vm660, %v1139, 0.0
        %1166 = vadd.xlane.f32.xlu0 %v1165
        %v1167 = vpop.xlane.xlu0 %1166
        %v1168 = vsel %vm660, %v1140, 0.0
        %1169 = vadd.xlane.f32.xlu0 %v1168
        %v1170 = vpop.xlane.xlu0 %1169
        %v1171 = vsel %vm660, %v1141, 0.0
        %1172 = vadd.xlane.f32.xlu0 %v1171
        %v1173 = vpop.xlane.xlu0 %1172
        %v1174 = vsel %vm660, %v1142, 0.0
        %1175 = vadd.xlane.f32.xlu0 %v1174
        %v1176 = vpop.xlane.xlu0 %1175
        %v1177 = vsel %vm660, %v1143, 0.0
        %1178 = vadd.xlane.f32.xlu0 %v1177
        %v1179 = vpop.xlane.xlu0 %1178
        %v1180 = vsel %vm660, %v1144, 0.0
        %1181 = vadd.xlane.f32.xlu0 %v1180
        %v1182 = vpop.xlane.xlu0 %1181
        %v1183 = vsel %vm660, %v1145, 0.0
        %1184 = vadd.xlane.f32.xlu0 %v1183
        %v1185 = vpop.xlane.xlu0 %1184
        %v1186 = vsel %vm660, %v1146, 0.0
        %1187 = vadd.xlane.f32.xlu0 %v1186
        %v1188 = vpop.xlane.xlu0 %1187
        %v1189 = vsel %vm660, %v1147, 0.0
        %1190 = vadd.xlane.f32.xlu0 %v1189
        %v1191 = vpop.xlane.xlu0 %1190
        %v1192 = vsel %vm660, %v1148, 0.0
        %1193 = vadd.xlane.f32.xlu0 %v1192
        %v1194 = vpop.xlane.xlu0 %1193
        %v1195 = vsel %vm660, %v1149, 0.0
        %1196 = vadd.xlane.f32.xlu0 %v1195
        %v1197 = vpop.xlane.xlu0 %1196
        %v1198 = vmul.f32 %v1152, %v1117
        %v1199 = vmul.f32 %v1155, %v1117
        %v1200 = vmul.f32 %v1158, %v1117
        %v1201 = vmul.f32 %v1161, %v1117
        %v1202 = vmul.f32 %v1164, %v1117
        %v1203 = vmul.f32 %v1167, %v1117
        %v1204 = vmul.f32 %v1170, %v1117
        %v1205 = vmul.f32 %v1173, %v1117
        %v1206 = vmul.f32 %v1176, %v1117
        %v1207 = vmul.f32 %v1179, %v1117
        %v1208 = vmul.f32 %v1182, %v1117
        %v1209 = vmul.f32 %v1185, %v1117
        %v1210 = vmul.f32 %v1188, %v1117
        %v1211 = vmul.f32 %v1191, %v1117
        %v1212 = vmul.f32 %v1194, %v1117
        %v1213 = vmul.f32 %v1197, %v1117
        %v1214 = vmul.f32 %v1118, %v1118
        %v1215 = vmul.f32 %v1119, %v1119
        %v1216 = vmul.f32 %v1120, %v1120
        %v1217 = vmul.f32 %v1121, %v1121
        %v1218 = vmul.f32 %v1122, %v1122
        %v1219 = vmul.f32 %v1123, %v1123
        %v1220 = vmul.f32 %v1124, %v1124
        %v1221 = vmul.f32 %v1125, %v1125
        %v1222 = vmul.f32 %v1126, %v1126
        %v1223 = vmul.f32 %v1127, %v1127
        %v1224 = vmul.f32 %v1128, %v1128
        %v1225 = vmul.f32 %v1129, %v1129
        %v1226 = vmul.f32 %v1130, %v1130
        %v1227 = vmul.f32 %v1131, %v1131
        %v1228 = vmul.f32 %v1132, %v1132
        %v1229 = vmul.f32 %v1133, %v1133
        %v1230 = vsub.f32 %v1198, %v1214
        %v1231 = vsub.f32 %v1199, %v1215
        %v1232 = vsub.f32 %v1200, %v1216
        %v1233 = vsub.f32 %v1201, %v1217
        %v1234 = vsub.f32 %v1202, %v1218
        %v1235 = vsub.f32 %v1203, %v1219
        %v1236 = vsub.f32 %v1204, %v1220
        %v1237 = vsub.f32 %v1205, %v1221
        %v1238 = vsub.f32 %v1206, %v1222
        %v1239 = vsub.f32 %v1207, %v1223
        %v1240 = vsub.f32 %v1208, %v1224
        %v1241 = vsub.f32 %v1209, %v1225
        %v1242 = vsub.f32 %v1210, %v1226
        %v1243 = vsub.f32 %v1211, %v1227
        %v1244 = vsub.f32 %v1212, %v1228
        %v1245 = vsub.f32 %v1213, %v1229
        %v1246 = vadd.f32 %v1230, 1e-05
        %v1247 = vadd.f32 %v1231, 1e-05
        %v1248 = vadd.f32 %v1232, 1e-05
        %v1249 = vadd.f32 %v1233, 1e-05
        %v1250 = vadd.f32 %v1234, 1e-05
        %v1251 = vadd.f32 %v1235, 1e-05
        %v1252 = vadd.f32 %v1236, 1e-05
        %v1253 = vadd.f32 %v1237, 1e-05
        %v1254 = vadd.f32 %v1238, 1e-05
        %v1255 = vadd.f32 %v1239, 1e-05
        %v1256 = vadd.f32 %v1240, 1e-05
        %v1257 = vadd.f32 %v1241, 1e-05
        %v1258 = vadd.f32 %v1242, 1e-05
        %v1259 = vadd.f32 %v1243, 1e-05
        %v1260 = vadd.f32 %v1244, 1e-05
        %v1261 = vadd.f32 %v1245, 1e-05
        %v1262 = vrsqrt.pop %v1246
        %v1263 = vmul.f32 %v1262, %v1246
        %v1264 = vmul.f32 %v1263, %v1262
        %v1265 = vmul.f32 0.5, %v1264
        %v1266 = vsub.f32 1.5, %v1265
        %v1267 = vmul.f32 %v1262, %v1266
        %vm1268 = vweird.f32 %v1246
        %vm1269 = vweird.f32 %v1262
        %vm1270 = vmor %vm1268, %vm1269
        %v1271 = vsel %vm1270, %v1262, %v1267
        %v1272 = vrsqrt.pop %v1247
        %v1273 = vmul.f32 %v1272, %v1247
        %v1274 = vmul.f32 %v1273, %v1272
        %v1275 = vmul.f32 0.5, %v1274
        %v1276 = vsub.f32 1.5, %v1275
        %v1277 = vmul.f32 %v1272, %v1276
        %vm1278 = vweird.f32 %v1247
        %vm1279 = vweird.f32 %v1272
        %vm1280 = vmor %vm1278, %vm1279
        %v1281 = vsel %vm1280, %v1272, %v1277
        %v1282 = vrsqrt.pop %v1248
        %v1283 = vmul.f32 %v1282, %v1248
        %v1284 = vmul.f32 %v1283, %v1282
        %v1285 = vmul.f32 0.5, %v1284
        %v1286 = vsub.f32 1.5, %v1285
        %v1287 = vmul.f32 %v1282, %v1286
        %vm1288 = vweird.f32 %v1248
        %vm1289 = vweird.f32 %v1282
        %vm1290 = vmor %vm1288, %vm1289
        %v1291 = vsel %vm1290, %v1282, %v1287
        %v1292 = vrsqrt.pop %v1249
        %v1293 = vmul.f32 %v1292, %v1249
        %v1294 = vmul.f32 %v1293, %v1292
        %v1295 = vmul.f32 0.5, %v1294
        %v1296 = vsub.f32 1.5, %v1295
        %v1297 = vmul.f32 %v1292, %v1296
        %vm1298 = vweird.f32 %v1249
        %vm1299 = vweird.f32 %v1292
        %vm1300 = vmor %vm1298, %vm1299
        %v1301 = vsel %vm1300, %v1292, %v1297
        %v1302 = vrsqrt.pop %v1250
        %v1303 = vmul.f32 %v1302, %v1250
        %v1304 = vmul.f32 %v1303, %v1302
        %v1305 = vmul.f32 0.5, %v1304
        %v1306 = vsub.f32 1.5, %v1305
        %v1307 = vmul.f32 %v1302, %v1306
        %vm1308 = vweird.f32 %v1250
        %vm1309 = vweird.f32 %v1302
        %vm1310 = vmor %vm1308, %vm1309
        %v1311 = vsel %vm1310, %v1302, %v1307
        %v1312 = vrsqrt.pop %v1251
        %v1313 = vmul.f32 %v1312, %v1251
        %v1314 = vmul.f32 %v1313, %v1312
        %v1315 = vmul.f32 0.5, %v1314
        %v1316 = vsub.f32 1.5, %v1315
        %v1317 = vmul.f32 %v1312, %v1316
        %vm1318 = vweird.f32 %v1251
        %vm1319 = vweird.f32 %v1312
        %vm1320 = vmor %vm1318, %vm1319
        %v1321 = vsel %vm1320, %v1312, %v1317
        %v1322 = vrsqrt.pop %v1252
        %v1323 = vmul.f32 %v1322, %v1252
        %v1324 = vmul.f32 %v1323, %v1322
        %v1325 = vmul.f32 0.5, %v1324
        %v1326 = vsub.f32 1.5, %v1325
        %v1327 = vmul.f32 %v1322, %v1326
        %vm1328 = vweird.f32 %v1252
        %vm1329 = vweird.f32 %v1322
        %vm1330 = vmor %vm1328, %vm1329
        %v1331 = vsel %vm1330, %v1322, %v1327
        %v1332 = vrsqrt.pop %v1253
        %v1333 = vmul.f32 %v1332, %v1253
        %v1334 = vmul.f32 %v1333, %v1332
        %v1335 = vmul.f32 0.5, %v1334
        %v1336 = vsub.f32 1.5, %v1335
        %v1337 = vmul.f32 %v1332, %v1336
        %vm1338 = vweird.f32 %v1253
        %vm1339 = vweird.f32 %v1332
        %vm1340 = vmor %vm1338, %vm1339
        %v1341 = vsel %vm1340, %v1332, %v1337
        %v1342 = vrsqrt.pop %v1254
        %v1343 = vmul.f32 %v1342, %v1254
        %v1344 = vmul.f32 %v1343, %v1342
        %v1345 = vmul.f32 0.5, %v1344
        %v1346 = vsub.f32 1.5, %v1345
        %v1347 = vmul.f32 %v1342, %v1346
        %vm1348 = vweird.f32 %v1254
        %vm1349 = vweird.f32 %v1342
        %vm1350 = vmor %vm1348, %vm1349
        %v1351 = vsel %vm1350, %v1342, %v1347
        %v1352 = vrsqrt.pop %v1255
        %v1353 = vmul.f32 %v1352, %v1255
        %v1354 = vmul.f32 %v1353, %v1352
        %v1355 = vmul.f32 0.5, %v1354
        %v1356 = vsub.f32 1.5, %v1355
        %v1357 = vmul.f32 %v1352, %v1356
        %vm1358 = vweird.f32 %v1255
        %vm1359 = vweird.f32 %v1352
        %vm1360 = vmor %vm1358, %vm1359
        %v1361 = vsel %vm1360, %v1352, %v1357
        %v1362 = vrsqrt.pop %v1256
        %v1363 = vmul.f32 %v1362, %v1256
        %v1364 = vmul.f32 %v1363, %v1362
        %v1365 = vmul.f32 0.5, %v1364
        %v1366 = vsub.f32 1.5, %v1365
        %v1367 = vmul.f32 %v1362, %v1366
        %vm1368 = vweird.f32 %v1256
        %vm1369 = vweird.f32 %v1362
        %vm1370 = vmor %vm1368, %vm1369
        %v1371 = vsel %vm1370, %v1362, %v1367
        %v1372 = vrsqrt.pop %v1257
        %v1373 = vmul.f32 %v1372, %v1257
        %v1374 = vmul.f32 %v1373, %v1372
        %v1375 = vmul.f32 0.5, %v1374
        %v1376 = vsub.f32 1.5, %v1375
        %v1377 = vmul.f32 %v1372, %v1376
        %vm1378 = vweird.f32 %v1257
        %vm1379 = vweird.f32 %v1372
        %vm1380 = vmor %vm1378, %vm1379
        %v1381 = vsel %vm1380, %v1372, %v1377
        %v1382 = vrsqrt.pop %v1258
        %v1383 = vmul.f32 %v1382, %v1258
        %v1384 = vmul.f32 %v1383, %v1382
        %v1385 = vmul.f32 0.5, %v1384
        %v1386 = vsub.f32 1.5, %v1385
        %v1387 = vmul.f32 %v1382, %v1386
        %vm1388 = vweird.f32 %v1258
        %vm1389 = vweird.f32 %v1382
        %vm1390 = vmor %vm1388, %vm1389
        %v1391 = vsel %vm1390, %v1382, %v1387
        %v1392 = vrsqrt.pop %v1259
        %v1393 = vmul.f32 %v1392, %v1259
        %v1394 = vmul.f32 %v1393, %v1392
        %v1395 = vmul.f32 0.5, %v1394
        %v1396 = vsub.f32 1.5, %v1395
        %v1397 = vmul.f32 %v1392, %v1396
        %vm1398 = vweird.f32 %v1259
        %vm1399 = vweird.f32 %v1392
        %vm1400 = vmor %vm1398, %vm1399
        %v1401 = vsel %vm1400, %v1392, %v1397
        %v1402 = vrsqrt.pop %v1260
        %v1403 = vmul.f32 %v1402, %v1260
        %v1404 = vmul.f32 %v1403, %v1402
        %v1405 = vmul.f32 0.5, %v1404
        %v1406 = vsub.f32 1.5, %v1405
        %v1407 = vmul.f32 %v1402, %v1406
        %vm1408 = vweird.f32 %v1260
        %vm1409 = vweird.f32 %v1402
        %vm1410 = vmor %vm1408, %vm1409
        %v1411 = vsel %vm1410, %v1402, %v1407
        %v1412 = vrsqrt.pop %v1261
        %v1413 = vmul.f32 %v1412, %v1261
        %v1414 = vmul.f32 %v1413, %v1412
        %v1415 = vmul.f32 0.5, %v1414
        %v1416 = vsub.f32 1.5, %v1415
        %v1417 = vmul.f32 %v1412, %v1416
        %vm1418 = vweird.f32 %v1261
        %vm1419 = vweird.f32 %v1412
        %vm1420 = vmor %vm1418, %vm1419
        %v1421 = vsel %vm1420, %v1412, %v1417
        %v1422 = vsub.f32 %v1047, %v1118
        %v1423 = vsub.f32 %v1048, %v1119
        %v1424 = vsub.f32 %v1049, %v1120
        %v1425 = vsub.f32 %v1050, %v1121
        %v1426 = vsub.f32 %v1051, %v1122
        %v1427 = vsub.f32 %v1052, %v1123
        %v1428 = vsub.f32 %v1053, %v1124
        %v1429 = vsub.f32 %v1054, %v1125
        %v1430 = vsub.f32 %v1055, %v1126
        %v1431 = vsub.f32 %v1056, %v1127
        %v1432 = vsub.f32 %v1057, %v1128
        %v1433 = vsub.f32 %v1058, %v1129
        %v1434 = vsub.f32 %v1059, %v1130
        %v1435 = vsub.f32 %v1060, %v1131
        %v1436 = vsub.f32 %v1061, %v1132
        %v1437 = vsub.f32 %v1062, %v1133
        %v1438 = vmul.f32 %v1422, %v1271
        %v1439 = vmul.f32 %v1423, %v1281
        %v1440 = vmul.f32 %v1424, %v1291
        %v1441 = vmul.f32 %v1425, %v1301
        %v1442 = vmul.f32 %v1426, %v1311
        %v1443 = vmul.f32 %v1427, %v1321
        %v1444 = vmul.f32 %v1428, %v1331
        %v1445 = vmul.f32 %v1429, %v1341
        %v1446 = vmul.f32 %v1430, %v1351
        %v1447 = vmul.f32 %v1431, %v1361
        %v1448 = vmul.f32 %v1432, %v1371
        %v1449 = vmul.f32 %v1433, %v1381
        %v1450 = vmul.f32 %v1434, %v1391
        %v1451 = vmul.f32 %v1435, %v1401
        %v1452 = vmul.f32 %v1436, %v1411
        %v1453 = vmul.f32 %v1437, %v1421
        %v1454 = vld [vmem:[%s3] sm:$0x1]
        %v1456 = vperm.slane %v1454, 0
        %v1458 = vmul.f32 %v1438, %v1456
        %v1459 = vmul.f32 %v1439, %v1456
        %v1460 = vmul.f32 %v1440, %v1456
        %v1461 = vmul.f32 %v1441, %v1456
        %v1462 = vmul.f32 %v1442, %v1456
        %v1463 = vmul.f32 %v1443, %v1456
        %v1464 = vmul.f32 %v1444, %v1456
        %v1465 = vmul.f32 %v1445, %v1456
        %v1466 = vmul.f32 %v1446, %v1456
        %v1467 = vmul.f32 %v1447, %v1456
        %v1468 = vmul.f32 %v1448, %v1456
        %v1469 = vmul.f32 %v1449, %v1456
        %v1470 = vmul.f32 %v1450, %v1456
        %v1471 = vmul.f32 %v1451, %v1456
        %v1472 = vmul.f32 %v1452, %v1456
        %v1473 = vmul.f32 %v1453, %v1456
        %v1474 = vld [vmem:[%s4] sm:$0x1]
        %v1476 = vperm.slane %v1474, 0
        %v1478 = vadd.f32 %v1458, %v1476
        %v1479 = vadd.f32 %v1459, %v1476
        %v1480 = vadd.f32 %v1460, %v1476
        %v1481 = vadd.f32 %v1461, %v1476
        %v1482 = vadd.f32 %v1462, %v1476
        %v1483 = vadd.f32 %v1463, %v1476
        %v1484 = vadd.f32 %v1464, %v1476
        %v1485 = vadd.f32 %v1465, %v1476
        %v1486 = vadd.f32 %v1466, %v1476
        %v1487 = vadd.f32 %v1467, %v1476
        %v1488 = vadd.f32 %v1468, %v1476
        %v1489 = vadd.f32 %v1469, %v1476
        %v1490 = vadd.f32 %v1470, %v1476
        %v1491 = vadd.f32 %v1471, %v1476
        %v1492 = vadd.f32 %v1472, %v1476
        %v1493 = vadd.f32 %v1473, %v1476
        %v1494 = vld [vmem:[%s6] sm:$0x1]
        %v1495 = vld [vmem:[%s5] sm:$0xff]
        %v1496 = vld [vmem:[%s5 + $0x8] sm:$0xff]
        %v1497 = vld [vmem:[%s5 + $0x10] sm:$0xff]
        %v1498 = vld [vmem:[%s5 + $0x18] sm:$0xff]
        %v1500 = vsel %vm660, %v1478, 0
        %v1503 = vsel %vm660, %v1479, 0
        %v1506 = vsel %vm660, %v1480, 0
        %v1509 = vsel %vm660, %v1481, 0
        %v1512 = vsel %vm660, %v1482, 0
        %v1515 = vsel %vm660, %v1483, 0
        %v1518 = vsel %vm660, %v1484, 0
        %v1521 = vsel %vm660, %v1485, 0
        %v1524 = vsel %vm660, %v1486, 0
        %v1527 = vsel %vm660, %v1487, 0
        %v1530 = vsel %vm660, %v1488, 0
        %v1533 = vsel %vm660, %v1489, 0
        %v1536 = vsel %vm660, %v1490, 0
        %v1539 = vsel %vm660, %v1491, 0
        %v1542 = vsel %vm660, %v1492, 0
        %v1545 = vsel %vm660, %v1493, 0
        %1547 = vmatpush.msra.mxu0 0.0
        %1548 = vmatpush.msra.mxu0 0.0
        %1549 = vmatpush.msra.mxu0 0.0
        %1550 = vmatpush.msra.mxu0 0.0
        %1551 = vmatpush.msra.mxu0 0.0
        %1552 = vmatpush.msra.mxu0 0.0
        %1553 = vmatpush.msra.mxu0 0.0
        %1554 = vmatpush.msra.mxu0 0.0
        %1555 = vmatpush.msra.mxu0 0.0
        %1556 = vmatpush.msra.mxu0 0.0
        %1557 = vmatpush.msra.mxu0 0.0
        %1558 = vmatpush.msra.mxu0 0.0
        %1559 = vmatpush.msra.mxu0 %v1498
        %1560 = vmatpush.msra.mxu0 %v1497
        %1561 = vmatpush.msra.mxu0 %v1496
        %1562 = vmatpush.msra.mxu0 %v1495
        %1563 = vmatmul.f32.gmra.mxu0 %v1500
        %v1564 = vpop.f32.mrf.mxu0
        %v1565 = vadd.f32 0.0, %v1564
        %1566 = vmatmul.f32.gmra.mxu0 %v1503
        %v1567 = vpop.f32.mrf.mxu0
        %v1568 = vadd.f32 0.0, %v1567
        %1569 = vmatmul.f32.gmra.mxu0 %v1506
        %v1570 = vpop.f32.mrf.mxu0
        %v1571 = vadd.f32 0.0, %v1570
        %1572 = vmatmul.f32.gmra.mxu0 %v1509
        %v1573 = vpop.f32.mrf.mxu0
        %v1574 = vadd.f32 0.0, %v1573
        %1575 = vmatmul.f32.gmra.mxu0 %v1512
        %v1576 = vpop.f32.mrf.mxu0
        %v1577 = vadd.f32 0.0, %v1576
        %1578 = vmatmul.f32.gmra.mxu0 %v1515
        %v1579 = vpop.f32.mrf.mxu0
        %v1580 = vadd.f32 0.0, %v1579
        %1581 = vmatmul.f32.gmra.mxu0 %v1518
        %v1582 = vpop.f32.mrf.mxu0
        %v1583 = vadd.f32 0.0, %v1582
        %1584 = vmatmul.f32.gmra.mxu0 %v1521
        %v1585 = vpop.f32.mrf.mxu0
        %v1586 = vadd.f32 0.0, %v1585
        %1587 = vmatmul.f32.gmra.mxu0 %v1524
        %v1588 = vpop.f32.mrf.mxu0
        %v1589 = vadd.f32 0.0, %v1588
        %1590 = vmatmul.f32.gmra.mxu0 %v1527
        %v1591 = vpop.f32.mrf.mxu0
        %v1592 = vadd.f32 0.0, %v1591
        %1593 = vmatmul.f32.gmra.mxu0 %v1530
        %v1594 = vpop.f32.mrf.mxu0
        %v1595 = vadd.f32 0.0, %v1594
        %1596 = vmatmul.f32.gmra.mxu0 %v1533
        %v1597 = vpop.f32.mrf.mxu0
        %v1598 = vadd.f32 0.0, %v1597
        %1599 = vmatmul.f32.gmra.mxu0 %v1536
        %v1600 = vpop.f32.mrf.mxu0
        %v1601 = vadd.f32 0.0, %v1600
        %1602 = vmatmul.f32.gmra.mxu0 %v1539
        %v1603 = vpop.f32.mrf.mxu0
        %v1604 = vadd.f32 0.0, %v1603
        %1605 = vmatmul.f32.gmra.mxu0 %v1542
        %v1606 = vpop.f32.mrf.mxu0
        %v1607 = vadd.f32 0.0, %v1606
        %1608 = vmatmul.f32.gmra.mxu0 %v1545
        %v1609 = vpop.f32.mrf.mxu0
        %v1610 = vadd.f32 0.0, %v1609
        %1611 = vdwg.mxu0
        %s1612 = scalar_lea.vmem %s5, 32
        %v1613 = vld [vmem:[%s1612] sm:$0xff]
        %v1614 = vld [vmem:[%s1612 + $0x8] sm:$0xff]
        %v1615 = vld [vmem:[%s1612 + $0x10] sm:$0xff]
        %v1616 = vld [vmem:[%s1612 + $0x18] sm:$0xff]
        %s1617 = scalar_lea.vmem %s5, 64
        %v1618 = vld [vmem:[%s1617] sm:$0xff]
        %v1619 = vld [vmem:[%s1617 + $0x8] sm:$0xff]
        %v1620 = vld [vmem:[%s1617 + $0x10] sm:$0xff]
        %v1621 = vld [vmem:[%s1617 + $0x18] sm:$0xff]
        %1622 = vmatpush.msra.mxu0 0.0
        %1623 = vmatpush.msra.mxu0 0.0
        %1624 = vmatpush.msra.mxu0 0.0
        %1625 = vmatpush.msra.mxu0 0.0
        %1626 = vmatpush.msra.mxu0 0.0
        %1627 = vmatpush.msra.mxu0 0.0
        %1628 = vmatpush.msra.mxu0 0.0
        %1629 = vmatpush.msra.mxu0 0.0
        %1630 = vmatpush.msra.mxu0 0.0
        %1631 = vmatpush.msra.mxu0 0.0
        %1632 = vmatpush.msra.mxu0 0.0
        %1633 = vmatpush.msra.mxu0 0.0
        %1634 = vmatpush.msra.mxu0 %v1621
        %1635 = vmatpush.msra.mxu0 %v1620
        %1636 = vmatpush.msra.mxu0 %v1619
        %1637 = vmatpush.msra.mxu0 %v1618
        %1638 = vmatmul.f32.gmra.mxu0 %v1500
        %v1639 = vpop.f32.mrf.mxu0
        %v1640 = vadd.f32 0.0, %v1639
        %1641 = vmatmul.f32.gmra.mxu0 %v1503
        %v1642 = vpop.f32.mrf.mxu0
        %v1643 = vadd.f32 0.0, %v1642
        %1644 = vmatmul.f32.gmra.mxu0 %v1506
        %v1645 = vpop.f32.mrf.mxu0
        %v1646 = vadd.f32 0.0, %v1645
        %1647 = vmatmul.f32.gmra.mxu0 %v1509
        %v1648 = vpop.f32.mrf.mxu0
        %v1649 = vadd.f32 0.0, %v1648
        %1650 = vmatmul.f32.gmra.mxu0 %v1512
        %v1651 = vpop.f32.mrf.mxu0
        %v1652 = vadd.f32 0.0, %v1651
        %1653 = vmatmul.f32.gmra.mxu0 %v1515
        %v1654 = vpop.f32.mrf.mxu0
        %v1655 = vadd.f32 0.0, %v1654
        %1656 = vmatmul.f32.gmra.mxu0 %v1518
        %v1657 = vpop.f32.mrf.mxu0
        %v1658 = vadd.f32 0.0, %v1657
        %1659 = vmatmul.f32.gmra.mxu0 %v1521
        %v1660 = vpop.f32.mrf.mxu0
        %v1661 = vadd.f32 0.0, %v1660
        %1662 = vmatmul.f32.gmra.mxu0 %v1524
        %v1663 = vpop.f32.mrf.mxu0
        %v1664 = vadd.f32 0.0, %v1663
        %1665 = vmatmul.f32.gmra.mxu0 %v1527
        %v1666 = vpop.f32.mrf.mxu0
        %v1667 = vadd.f32 0.0, %v1666
        %1668 = vmatmul.f32.gmra.mxu0 %v1530
        %v1669 = vpop.f32.mrf.mxu0
        %v1670 = vadd.f32 0.0, %v1669
        %1671 = vmatmul.f32.gmra.mxu0 %v1533
        %v1672 = vpop.f32.mrf.mxu0
        %v1673 = vadd.f32 0.0, %v1672
        %1674 = vmatmul.f32.gmra.mxu0 %v1536
        %v1675 = vpop.f32.mrf.mxu0
        %v1676 = vadd.f32 0.0, %v1675
        %1677 = vmatmul.f32.gmra.mxu0 %v1539
        %v1678 = vpop.f32.mrf.mxu0
        %v1679 = vadd.f32 0.0, %v1678
        %1680 = vmatmul.f32.gmra.mxu0 %v1542
        %v1681 = vpop.f32.mrf.mxu0
        %v1682 = vadd.f32 0.0, %v1681
        %1683 = vmatmul.f32.gmra.mxu0 %v1545
        %v1684 = vpop.f32.mrf.mxu0
        %v1685 = vadd.f32 0.0, %v1684
        %1686 = vdwg.mxu0
        %v1688 = vperm.slane %v1494, 0
        %1690 = vmatpush.msra.mxu0 0.0
        %1691 = vmatpush.msra.mxu0 0.0
        %1692 = vmatpush.msra.mxu0 0.0
        %1693 = vmatpush.msra.mxu0 0.0
        %1694 = vmatpush.msra.mxu0 0.0
        %1695 = vmatpush.msra.mxu0 0.0
        %1696 = vmatpush.msra.mxu0 0.0
        %1697 = vmatpush.msra.mxu0 0.0
        %1698 = vmatpush.msra.mxu0 0.0
        %1699 = vmatpush.msra.mxu0 0.0
        %1700 = vmatpush.msra.mxu0 0.0
        %1701 = vmatpush.msra.mxu0 0.0
        %1702 = vmatpush.msra.mxu0 %v1616
        %1703 = vmatpush.msra.mxu0 %v1615
        %1704 = vmatpush.msra.mxu0 %v1614
        %1705 = vmatpush.msra.mxu0 %v1613
        %1706 = vmatmul.f32.gmra.mxu0 %v1500
        %v1707 = vpop.f32.mrf.mxu0
        %v1708 = vadd.f32 %v1688, %v1707
        %1709 = vmatmul.f32.gmra.mxu0 %v1503
        %v1710 = vpop.f32.mrf.mxu0
        %v1711 = vadd.f32 %v1688, %v1710
        %1712 = vmatmul.f32.gmra.mxu0 %v1506
        %v1713 = vpop.f32.mrf.mxu0
        %v1714 = vadd.f32 %v1688, %v1713
        %1715 = vmatmul.f32.gmra.mxu0 %v1509
        %v1716 = vpop.f32.mrf.mxu0
        %v1717 = vadd.f32 %v1688, %v1716
        %1718 = vmatmul.f32.gmra.mxu0 %v1512
        %v1719 = vpop.f32.mrf.mxu0
        %v1720 = vadd.f32 %v1688, %v1719
        %1721 = vmatmul.f32.gmra.mxu0 %v1515
        %v1722 = vpop.f32.mrf.mxu0
        %v1723 = vadd.f32 %v1688, %v1722
        %1724 = vmatmul.f32.gmra.mxu0 %v1518
        %v1725 = vpop.f32.mrf.mxu0
        %v1726 = vadd.f32 %v1688, %v1725
        %1727 = vmatmul.f32.gmra.mxu0 %v1521
        %v1728 = vpop.f32.mrf.mxu0
        %v1729 = vadd.f32 %v1688, %v1728
        %1730 = vmatmul.f32.gmra.mxu0 %v1524
        %v1731 = vpop.f32.mrf.mxu0
        %v1732 = vadd.f32 %v1688, %v1731
        %1733 = vmatmul.f32.gmra.mxu0 %v1527
        %v1734 = vpop.f32.mrf.mxu0
        %v1735 = vadd.f32 %v1688, %v1734
        %1736 = vmatmul.f32.gmra.mxu0 %v1530
        %v1737 = vpop.f32.mrf.mxu0
        %v1738 = vadd.f32 %v1688, %v1737
        %1739 = vmatmul.f32.gmra.mxu0 %v1533
        %v1740 = vpop.f32.mrf.mxu0
        %v1741 = vadd.f32 %v1688, %v1740
        %1742 = vmatmul.f32.gmra.mxu0 %v1536
        %v1743 = vpop.f32.mrf.mxu0
        %v1744 = vadd.f32 %v1688, %v1743
        %1745 = vmatmul.f32.gmra.mxu0 %v1539
        %v1746 = vpop.f32.mrf.mxu0
        %v1747 = vadd.f32 %v1688, %v1746
        %1748 = vmatmul.f32.gmra.mxu0 %v1542
        %v1749 = vpop.f32.mrf.mxu0
        %v1750 = vadd.f32 %v1688, %v1749
        %1751 = vmatmul.f32.gmra.mxu0 %v1545
        %v1752 = vpop.f32.mrf.mxu0
        %v1753 = vadd.f32 %v1688, %v1752
        %1754 = vdwg.mxu0
        %v1755 = vrot.slane %v1565, 7
        %v1756 = vrot.slane %v1568, 7
        %v1757 = vrot.slane %v1571, 7
        %v1758 = vrot.slane %v1574, 7
        %v1759 = vrot.slane %v1577, 7
        %v1760 = vrot.slane %v1580, 7
        %v1761 = vrot.slane %v1583, 7
        %v1762 = vrot.slane %v1586, 7
        %v1763 = vrot.slane %v1589, 7
        %v1764 = vrot.slane %v1592, 7
        %v1765 = vrot.slane %v1595, 7
        %v1766 = vrot.slane %v1598, 7
        %v1767 = vrot.slane %v1601, 7
        %v1768 = vrot.slane %v1604, 7
        %v1769 = vrot.slane %v1607, 7
        %v1770 = vrot.slane %v1610, 7
        %v1771 = vsel %vm933, %v1769, %v1770
        %v1772 = vsel %vm933, %v1768, %v1769
        %v1773 = vsel %vm933, %v1767, %v1768
        %v1774 = vsel %vm933, %v1766, %v1767
        %v1775 = vsel %vm933, %v1765, %v1766
        %v1776 = vsel %vm933, %v1764, %v1765
        %v1777 = vsel %vm933, %v1763, %v1764
        %v1778 = vsel %vm933, %v1762, %v1763
        %v1779 = vsel %vm933, %v1761, %v1762
        %v1780 = vsel %vm933, %v1760, %v1761
        %v1781 = vsel %vm933, %v1759, %v1760
        %v1782 = vsel %vm933, %v1758, %v1759
        %v1783 = vsel %vm933, %v1757, %v1758
        %v1784 = vsel %vm933, %v1756, %v1757
        %v1785 = vsel %vm933, %v1755, %v1756
        %v1786 = vsel %vm933, %v1770, %v1755
        %v1787 = vsel %vm591, %v1786, 0.0
        %v1788 = vsel %vm592, %v1785, 0.0
        %v1789 = vsel %vm593, %v1784, 0.0
        %v1790 = vsel %vm594, %v1783, 0.0
        %v1791 = vsel %vm595, %v1782, 0.0
        %v1792 = vsel %vm596, %v1781, 0.0
        %v1793 = vsel %vm597, %v1780, 0.0
        %v1794 = vsel %vm598, %v1779, 0.0
        %v1795 = vsel %vm599, %v1778, 0.0
        %v1796 = vsel %vm600, %v1777, 0.0
        %v1797 = vsel %vm601, %v1776, 0.0
        %v1798 = vsel %vm602, %v1775, 0.0
        %v1799 = vsel %vm603, %v1774, 0.0
        %v1800 = vsel %vm604, %v1773, 0.0
        %v1801 = vsel %vm605, %v1772, 0.0
        %v1802 = vsel %vm606, %v1771, 0.0
        %v1803 = vadd.f32 %v1708, %v1787
        %v1804 = vadd.f32 %v1711, %v1788
        %v1805 = vadd.f32 %v1714, %v1789
        %v1806 = vadd.f32 %v1717, %v1790
        %v1807 = vadd.f32 %v1720, %v1791
        %v1808 = vadd.f32 %v1723, %v1792
        %v1809 = vadd.f32 %v1726, %v1793
        %v1810 = vadd.f32 %v1729, %v1794
        %v1811 = vadd.f32 %v1732, %v1795
        %v1812 = vadd.f32 %v1735, %v1796
        %v1813 = vadd.f32 %v1738, %v1797
        %v1814 = vadd.f32 %v1741, %v1798
        %v1815 = vadd.f32 %v1744, %v1799
        %v1816 = vadd.f32 %v1747, %v1800
        %v1817 = vadd.f32 %v1750, %v1801
        %v1818 = vadd.f32 %v1753, %v1802
        %v1819 = vrot.slane %v1640, 1
        %v1820 = vrot.slane %v1643, 1
        %v1821 = vrot.slane %v1646, 1
        %v1822 = vrot.slane %v1649, 1
        %v1823 = vrot.slane %v1652, 1
        %v1824 = vrot.slane %v1655, 1
        %v1825 = vrot.slane %v1658, 1
        %v1826 = vrot.slane %v1661, 1
        %v1827 = vrot.slane %v1664, 1
        %v1828 = vrot.slane %v1667, 1
        %v1829 = vrot.slane %v1670, 1
        %v1830 = vrot.slane %v1673, 1
        %v1831 = vrot.slane %v1676, 1
        %v1832 = vrot.slane %v1679, 1
        %v1833 = vrot.slane %v1682, 1
        %v1834 = vrot.slane %v1685, 1
        %v1835 = vsel %vm998, %v1833, %v1834
        %v1836 = vsel %vm998, %v1832, %v1833
        %v1837 = vsel %vm998, %v1831, %v1832
        %v1838 = vsel %vm998, %v1830, %v1831
        %v1839 = vsel %vm998, %v1829, %v1830
        %v1840 = vsel %vm998, %v1828, %v1829
        %v1841 = vsel %vm998, %v1827, %v1828
        %v1842 = vsel %vm998, %v1826, %v1827
        %v1843 = vsel %vm998, %v1825, %v1826
        %v1844 = vsel %vm998, %v1824, %v1825
        %v1845 = vsel %vm998, %v1823, %v1824
        %v1846 = vsel %vm998, %v1822, %v1823
        %v1847 = vsel %vm998, %v1821, %v1822
        %v1848 = vsel %vm998, %v1820, %v1821
        %v1849 = vsel %vm998, %v1819, %v1820
        %v1850 = vsel %vm998, %v1834, %v1819
        %v1851 = vsel %vm639, %v1849, 0.0
        %v1852 = vsel %vm640, %v1848, 0.0
        %v1853 = vsel %vm641, %v1847, 0.0
        %v1854 = vsel %vm642, %v1846, 0.0
        %v1855 = vsel %vm643, %v1845, 0.0
        %v1856 = vsel %vm644, %v1844, 0.0
        %v1857 = vsel %vm645, %v1843, 0.0
        %v1858 = vsel %vm646, %v1842, 0.0
        %v1859 = vsel %vm647, %v1841, 0.0
        %v1860 = vsel %vm648, %v1840, 0.0
        %v1861 = vsel %vm649, %v1839, 0.0
        %v1862 = vsel %vm650, %v1838, 0.0
        %v1863 = vsel %vm651, %v1837, 0.0
        %v1864 = vsel %vm652, %v1836, 0.0
        %v1865 = vsel %vm653, %v1835, 0.0
        %v1866 = vsel %vm654, %v1850, 0.0
        %v1867 = vadd.f32 %v1803, %v1851
        %v1868 = vadd.f32 %v1804, %v1852
        %v1869 = vadd.f32 %v1805, %v1853
        %v1870 = vadd.f32 %v1806, %v1854
        %v1871 = vadd.f32 %v1807, %v1855
        %v1872 = vadd.f32 %v1808, %v1856
        %v1873 = vadd.f32 %v1809, %v1857
        %v1874 = vadd.f32 %v1810, %v1858
        %v1875 = vadd.f32 %v1811, %v1859
        %v1876 = vadd.f32 %v1812, %v1860
        %v1877 = vadd.f32 %v1813, %v1861
        %v1878 = vadd.f32 %v1814, %v1862
        %v1879 = vadd.f32 %v1815, %v1863
        %v1880 = vadd.f32 %v1816, %v1864
        %v1881 = vadd.f32 %v1817, %v1865
        %v1882 = vadd.f32 %v1818, %v1866
        %v1883 = vmax.f32 %v1867, 0.0
        %v1884 = vmax.f32 %v1868, 0.0
        %v1885 = vmax.f32 %v1869, 0.0
        %v1886 = vmax.f32 %v1870, 0.0
        %v1887 = vmax.f32 %v1871, 0.0
        %v1888 = vmax.f32 %v1872, 0.0
        %v1889 = vmax.f32 %v1873, 0.0
        %v1890 = vmax.f32 %v1874, 0.0
        %v1891 = vmax.f32 %v1875, 0.0
        %v1892 = vmax.f32 %v1876, 0.0
        %v1893 = vmax.f32 %v1877, 0.0
        %v1894 = vmax.f32 %v1878, 0.0
        %v1895 = vmax.f32 %v1879, 0.0
        %v1896 = vmax.f32 %v1880, 0.0
        %v1897 = vmax.f32 %v1881, 0.0
        %v1898 = vmax.f32 %v1882, 0.0
        %v1899 = vld [vmem:[%s7] sm:$0x3]
        %v1901 = vsel %vm660, %v1899, 0
        %v1904 = vsel %vm660, %v1883, 0
        %v1907 = vsel %vm660, %v1884, 0
        %v1910 = vsel %vm660, %v1885, 0
        %v1913 = vsel %vm660, %v1886, 0
        %v1916 = vsel %vm660, %v1887, 0
        %v1919 = vsel %vm660, %v1888, 0
        %v1922 = vsel %vm660, %v1889, 0
        %v1925 = vsel %vm660, %v1890, 0
        %v1928 = vsel %vm660, %v1891, 0
        %v1931 = vsel %vm660, %v1892, 0
        %v1934 = vsel %vm660, %v1893, 0
        %v1937 = vsel %vm660, %v1894, 0
        %v1940 = vsel %vm660, %v1895, 0
        %v1943 = vsel %vm660, %v1896, 0
        %v1946 = vsel %vm660, %v1897, 0
        %v1949 = vsel %vm660, %v1898, 0
        %1951 = vmatpush.xpose.msra.mxu0 %v1949
        %1952 = vmatpush.xpose.msra.mxu0 %v1946
        %1953 = vmatpush.xpose.msra.mxu0 %v1943
        %1954 = vmatpush.xpose.msra.mxu0 %v1940
        %1955 = vmatpush.xpose.msra.mxu0 %v1937
        %1956 = vmatpush.xpose.msra.mxu0 %v1934
        %1957 = vmatpush.xpose.msra.mxu0 %v1931
        %1958 = vmatpush.xpose.msra.mxu0 %v1928
        %1959 = vmatpush.xpose.msra.mxu0 %v1925
        %1960 = vmatpush.xpose.msra.mxu0 %v1922
        %1961 = vmatpush.xpose.msra.mxu0 %v1919
        %1962 = vmatpush.xpose.msra.mxu0 %v1916
        %1963 = vmatpush.xpose.msra.mxu0 %v1913
        %1964 = vmatpush.xpose.msra.mxu0 %v1910
        %1965 = vmatpush.xpose.msra.mxu0 %v1907
        %1966 = vmatpush.xpose.msra.mxu0 %v1904
        %1967 = vmatmul.f32.gmra.mxu0 %v1901
        %v1968 = vpop.f32.mrf.mxu0
        %v1969 = vadd.f32 0.0, %v1968
        %1970 = vdwg.mxu0
        %v1971 = vmul.f32 %v1883, %v1883
        %v1972 = vmul.f32 %v1884, %v1884
        %v1973 = vmul.f32 %v1885, %v1885
        %v1974 = vmul.f32 %v1886, %v1886
        %v1975 = vmul.f32 %v1887, %v1887
        %v1976 = vmul.f32 %v1888, %v1888
        %v1977 = vmul.f32 %v1889, %v1889
        %v1978 = vmul.f32 %v1890, %v1890
        %v1979 = vmul.f32 %v1891, %v1891
        %v1980 = vmul.f32 %v1892, %v1892
        %v1981 = vmul.f32 %v1893, %v1893
        %v1982 = vmul.f32 %v1894, %v1894
        %v1983 = vmul.f32 %v1895, %v1895
        %v1984 = vmul.f32 %v1896, %v1896
        %v1985 = vmul.f32 %v1897, %v1897
        %v1986 = vmul.f32 %v1898, %v1898
        %v1987 = vrot.slane %v1899, 1
        %v1988 = vsel %vm660, %v1987, 0
        %v1991 = vsel %vm660, %v1971, 0
        %v1994 = vsel %vm660, %v1972, 0
        %v1997 = vsel %vm660, %v1973, 0
        %v2000 = vsel %vm660, %v1974, 0
        %v2003 = vsel %vm660, %v1975, 0
        %v2006 = vsel %vm660, %v1976, 0
        %v2009 = vsel %vm660, %v1977, 0
        %v2012 = vsel %vm660, %v1978, 0
        %v2015 = vsel %vm660, %v1979, 0
        %v2018 = vsel %vm660, %v1980, 0
        %v2021 = vsel %vm660, %v1981, 0
        %v2024 = vsel %vm660, %v1982, 0
        %v2027 = vsel %vm660, %v1983, 0
        %v2030 = vsel %vm660, %v1984, 0
        %v2033 = vsel %vm660, %v1985, 0
        %v2036 = vsel %vm660, %v1986, 0
        %2038 = vmatpush.xpose.msra.mxu0 %v2036
        %2039 = vmatpush.xpose.msra.mxu0 %v2033
        %2040 = vmatpush.xpose.msra.mxu0 %v2030
        %2041 = vmatpush.xpose.msra.mxu0 %v2027
        %2042 = vmatpush.xpose.msra.mxu0 %v2024
        %2043 = vmatpush.xpose.msra.mxu0 %v2021
        %2044 = vmatpush.xpose.msra.mxu0 %v2018
        %2045 = vmatpush.xpose.msra.mxu0 %v2015
        %2046 = vmatpush.xpose.msra.mxu0 %v2012
        %2047 = vmatpush.xpose.msra.mxu0 %v2009
        %2048 = vmatpush.xpose.msra.mxu0 %v2006
        %2049 = vmatpush.xpose.msra.mxu0 %v2003
        %2050 = vmatpush.xpose.msra.mxu0 %v2000
        %2051 = vmatpush.xpose.msra.mxu0 %v1997
        %2052 = vmatpush.xpose.msra.mxu0 %v1994
        %2053 = vmatpush.xpose.msra.mxu0 %v1991
        %2054 = vmatmul.f32.gmra.mxu0 %v1988
        %v2055 = vpop.f32.mrf.mxu0
        %v2056 = vadd.f32 0.0, %v2055
        %2057 = vdwg.mxu0
        %v2058 = vmul.f32 %v1969, %v1969
        %v2060 = vrot.slane %v2058, 1
        %v2062 = vsub.f32 %v2056, %v2060
        %v2063 = vadd.f32 %v2062, 1e-05
        %v2064 = vrsqrt.pop %v2063
        %v2065 = vmul.f32 %v2064, %v2063
        %v2066 = vmul.f32 %v2065, %v2064
        %v2067 = vmul.f32 0.5, %v2066
        %v2068 = vsub.f32 1.5, %v2067
        %v2069 = vmul.f32 %v2064, %v2068
        %vm2070 = vweird.f32 %v2063
        %vm2071 = vweird.f32 %v2064
        %vm2072 = vmor %vm2070, %vm2071
        %v2073 = vsel %vm2072, %v2064, %v2069
        %v2074 = vmul.f32 %v1969, %v2073
        %v2075 = vld [vmem:[#allocation2] sm:$0x1]
        %2077 = vset.pattern.permute.xlu0 0
        %2078 = vperm.xlu0 %2077, %v2075
        %v2079 = vpop.permute.xlu0 %2078
        %v2081 = vperm.slane %v2079, 0
        %v2082 = vadd.f32 %v2074, %v2081
        %2083 = vst [vmem:[%s327] sm:$0x1] %v2082
        %s2084 = sand.u32 %s227, 1
        %s2085 = scalar_lea.sflag [#allocation4], %s2084
        %s2086 = sand.u32 %s227, 1
        %s2087 = scalar_lea.vmem [#allocation3], %s2086
        // Predicated region
        $region57: #{tpu_custom_call.1} parent=55 // pred_check
          %p2088 = pneg %p237
        $region58: #{tpu_custom_call.1} parent=55 // pred_check_branch
          %2090 = sbr.rel (%p2088) target = $region60
        $region59: #{tpu_custom_call.1} parent=55 // pred_region
          %2092 = vsyncadd %s2085, 0
          %s2093 = scalar_lea.hbm %s9, %s25
          %s2095 = sshll.u32 %s2087, 4
          %s2096 = int_to_ptr.vmem [resolvable:$true] %s2095
          %s2097 = sshll.u32 %s2093, 4
          %s2098 = int_to_ptr.hbm [resolvable:$true] %s2097
          %2100 = dma.vmem_to_hbm [thread:$0]  %s2096, 16, %s2098, %s2085
        $region60: #{tpu_custom_call.1} parent=55 // pred_fallthru
          _
      $region56: #{tpu_custom_call.1} parent=5 // pred_fallthru
        _
      %p2101 = scmp.le.s32.totalorder 2, %s20
      // Predicated region
      $region61: #{tpu_custom_call.1} parent=5 // pred_check
        %p2102 = pneg %p2101
      $region62: #{tpu_custom_call.1} parent=5 // pred_check_branch
        %2104 = sbr.rel (%p2102) target = $region64
      $region63: #{tpu_custom_call.1} parent=5 // pred_region
        %s2105 = ssub.s32 %s20, 2
        // Predicated region
        $region65: #{tpu_custom_call.1} parent=63 // pred_check
          %p2106 = pneg %p243
        $region66: #{tpu_custom_call.1} parent=63 // pred_check_branch
          %2108 = sbr.rel (%p2106) target = $region68
        $region67: #{tpu_custom_call.1} parent=63 // pred_region
          %s2109 = sand.u32 %s228, 1
          %s2110 = scalar_lea.sflag [#allocation4], %s2109
          %s2111 = sand.u32 %s228, 1
          %s2112 = scalar_lea.vmem [#allocation3], %s2111
          %2114 = dma.done %s2110, 16
        $region68: #{tpu_custom_call.1} parent=63 // pred_fallthru
          _
      $region64: #{tpu_custom_call.1} parent=5 // pred_fallthru
        _
    $region6: #{tpu_custom_call.1} parent=1 // loop_footer
      %s24 = sadd.s32 1, %s20
    $region7: #{tpu_custom_call.1} parent=1 // loop_footer_branch
      %19 = sbr.rel target = $region3
    $region8: #{tpu_custom_call.1} parent=1 // loop_exit
      _
    %2115 = vsyncpa [#allocation4], 1
    %s2116 = scalar_lea.sflag [#allocation4], 1
    %2117 = vsyncpa %s2116, 1

</llo_original>
